<compile_context>
chip_gen: v5e
topology: v5e:2x2
jax: 0.10.0
libtpu: 0.0.40
codegen_flags: <defaults>
</compile_context>

<pallas_src>
import jax
import jax.numpy as jnp
from jax.experimental import pallas as pl
from jax.experimental.pallas import tpu as pltpu

BN_EPS = 1e-5
LANE = 128


def _round_up(n, m):
    return ((n + m - 1) // m) * m


def _mlp_kernel(x_ref,
                w1_ref, b1_ref,
                w2_ref, b2_ref,
                w3_ref, b3_ref,
                a_ref,
                o_ref):
    a1 = a_ref[0]            # PReLU slopes (SMEM, packed)
    a2 = a_ref[1]

    # ---- fc1 (+ folded BN1 + bias) + PReLU ----
    h = jnp.dot(x_ref[...].astype(w1_ref.dtype), w1_ref[...],
                preferred_element_type=jnp.float32)
    h = h + b1_ref[...]
    h = jnp.where(h >= 0.0, h, a1 * h)
    # (dropout1: identity in eval mode)

    # ---- fc2 (+ folded BN2 + bias) + PReLU ----
    h = jnp.dot(h.astype(w2_ref.dtype), w2_ref[...],
                preferred_element_type=jnp.float32)
    h = h + b2_ref[...]
    h = jnp.where(h >= 0.0, h, a2 * h)
    # (dropout2: identity in eval mode)

    # ---- fc3 (lane-padded to 128 columns) + tanh ----
    h = jnp.dot(h.astype(w3_ref.dtype), w3_ref[...],
                preferred_element_type=jnp.float32)
    h = h + b3_ref[...]
    o_ref[...] = jnp.tanh(h).astype(o_ref.dtype)


def baseline_model1_forward(x, params, *, block_b=256, weights_dtype=jnp.float32):
    """x: (B, inputsize) float32.  Returns (B, num_classes) float32."""
    f32 = jnp.float32
    B, inputsize = x.shape

    # ---- fold BN (eval mode) + linear bias into weights/bias (exact) ----
    def fold_bn(gamma, beta, mean, var):
        scale = gamma / jnp.sqrt(var + BN_EPS)
        shift = beta - mean * scale
        return scale, shift

    s1, t1 = fold_bn(params["bn1_g"], params["bn1_b"], params["bn1_m"], params["bn1_v"])
    s2, t2 = fold_bn(params["bn2_g"], params["bn2_b"], params["bn2_m"], params["bn2_v"])

    w1 = (params["w1"].T * s1[None, :]).astype(weights_dtype)       # (in, 1024)
    b1 = (params["b1"] * s1 + t1)[None, :].astype(f32)              # (1, 1024)
    w2 = (params["w2"].T * s2[None, :]).astype(weights_dtype)       # (1024, 512)
    b2 = (params["b2"] * s2 + t2)[None, :].astype(f32)              # (1, 512)

    # ---- pad the classifier output to a lane-dense 128 multiple ----
    num_classes = params["w3"].shape[0]
    n_pad = _round_up(num_classes, LANE)
    w3 = jnp.zeros((params["w3"].shape[1], n_pad), weights_dtype)
    w3 = w3.at[:, :num_classes].set(params["w3"].T.astype(weights_dtype))
    b3 = jnp.zeros((1, n_pad), f32).at[:, :num_classes].set(params["b3"])

    # ---- PReLU scalars packed into one SMEM array ----
    prelu = jnp.stack([params["prelu1"], params["prelu2"]]).astype(f32)   # (2,)

    # ---- batch tiling (weights stay resident; x/out are pipelined) ----
    tb = _round_up(min(block_b, _round_up(B, 8)), 8)
    b_padded = _round_up(B, tb)
    if b_padded != B:
        x = jnp.pad(x, ((0, b_padded - B), (0, 0)))
    grid = (b_padded // tb,)

    def resident(shape):
        return pl.BlockSpec(shape, lambda i: (0, 0))

    in_specs = [
        pl.BlockSpec((tb, inputsize), lambda i: (i, 0)),
        resident(w1.shape), resident(b1.shape),
        resident(w2.shape), resident(b2.shape),
        resident(w3.shape), resident(b3.shape),
        pl.BlockSpec(memory_space=pltpu.MemorySpace.SMEM),
    ]

    out = pl.pallas_call(
        _mlp_kernel,
        out_shape=jax.ShapeDtypeStruct((b_padded, n_pad), f32),
        grid=grid,
        in_specs=in_specs,
        out_specs=pl.BlockSpec((tb, n_pad), lambda i: (i, 0)),
        compiler_params=pltpu.CompilerParams(
            dimension_semantics=("parallel",),
        ),
    )(x, w1, b1, w2, b2, w3, b3, prelu)

    return out[:B, :num_classes]


def init_params(key, inputsize, num_classes):
    """Deterministic parameter init mirroring BaselineModel1.__init__."""
    k1, k2, k3 = jax.random.split(key, 3)
    return {
        # nn.Linear: weight ~ N(0, 0.02), bias = 0 (PyTorch-style (out, in))
        "w1": 0.02 * jax.random.normal(k1, (1024, inputsize), jnp.float32),
        "b1": jnp.zeros((1024,), jnp.float32),
        "w2": 0.02 * jax.random.normal(k2, (512, 1024), jnp.float32),
        "b2": jnp.zeros((512,), jnp.float32),
        "w3": 0.02 * jax.random.normal(k3, (num_classes, 512), jnp.float32),
        "b3": jnp.zeros((num_classes,), jnp.float32),
        # nn.BatchNorm1d defaults
        "bn1_g": jnp.ones((1024,), jnp.float32),
        "bn1_b": jnp.zeros((1024,), jnp.float32),
        "bn1_m": jnp.zeros((1024,), jnp.float32),
        "bn1_v": jnp.ones((1024,), jnp.float32),
        "bn2_g": jnp.ones((512,), jnp.float32),
        "bn2_b": jnp.zeros((512,), jnp.float32),
        "bn2_m": jnp.zeros((512,), jnp.float32),
        "bn2_v": jnp.ones((512,), jnp.float32),
        # nn.PReLU default single-parameter slope
        "prelu1": jnp.array(0.25, jnp.float32),
        "prelu2": jnp.array(0.25, jnp.float32),
    }


def _reference_forward(x, params):
    """Pure-JAX reference of the same eval-mode forward."""
    def bn(h, g, b, m, v):
        return (h - m) / jnp.sqrt(v + BN_EPS) * g + b

    def prelu(h, a):
        return jnp.where(h >= 0, h, a * h)

    h = x @ params["w1"].T + params["b1"]
    h = prelu(bn(h, params["bn1_g"], params["bn1_b"], params["bn1_m"], params["bn1_v"]),
              params["prelu1"])
    h = h @ params["w2"].T + params["b2"]
    h = prelu(bn(h, params["bn2_g"], params["bn2_b"], params["bn2_m"], params["bn2_v"]),
              params["prelu2"])
    h = h @ params["w3"].T + params["b3"]
    return jnp.tanh(h)


if __name__ == "__main__":
    key = jax.random.PRNGKey(0)
    kx, kp = jax.random.split(key)

    batch = 8
    inputsize = 32
    num_classes = 10

    x = jax.random.normal(kx, (batch, inputsize), jnp.float32)
    params = init_params(kp, inputsize, num_classes)
    ref = _reference_forward(x, params)

    # f32 path (exact eval-mode semantics).
    out = jax.block_until_ready(baseline_model1_forward(x, params))
    assert out.shape == (batch, num_classes), out.shape
    assert jnp.allclose(out, ref, atol=1e-5, rtol=1e-5), "f32 mismatch vs reference"

    # Larger, non-multiple batch exercises the batch-grid tiling + pad/slice path.
    xb = jax.random.normal(kx, (300, inputsize), jnp.float32)
    outb = jax.block_until_ready(baseline_model1_forward(xb, params, block_b=256))
    refb = _reference_forward(xb, params)
    assert outb.shape == (300, num_classes), outb.shape
    assert jnp.allclose(outb, refb, atol=1e-4, rtol=1e-4), "tiled mismatch vs reference"

    # bf16-weight path (MXU throughput / halved weight VMEM) — looser tolerance.
    out_bf16 = jax.block_until_ready(
        baseline_model1_forward(x, params, weights_dtype=jnp.bfloat16))
    assert jnp.allclose(out_bf16, ref, atol=3e-2, rtol=3e-2), "bf16 mismatch vs reference"

    print("KERNEL_OK")
</pallas_src>

<mosaic_0001>
module attributes {stable_mosaic.version = 11 : i64} {
  func.func @_mlp_kernel(%arg0: i32, %arg1: memref<8x32xf32, #tpu.memory_space<vmem>>, %arg2: memref<32x1024xf32, #tpu.memory_space<vmem>>, %arg3: memref<1x1024xf32, #tpu.memory_space<vmem>>, %arg4: memref<1024x512xf32, #tpu.memory_space<vmem>>, %arg5: memref<1x512xf32, #tpu.memory_space<vmem>>, %arg6: memref<512x128xf32, #tpu.memory_space<vmem>>, %arg7: memref<1x128xf32, #tpu.memory_space<vmem>>, %arg8: memref<2xf32, #tpu.memory_space<smem>>, %arg9: memref<8x128xf32, #tpu.memory_space<vmem>>) attributes {dimension_semantics = [#tpu.dimension_semantics<parallel>], iteration_bounds = array<i64: 1>, scalar_prefetch = 0 : i64, scratch_operands = 0 : i64, tpu.core_type = #tpu.core_type<tc>, window_params = [{transform_indices = @transform_0, window_bounds = array<i64: 8, 32>}, {pipeline_mode = #tpu.pipeline_mode<synchronous>, transform_indices = @transform_1, window_bounds = array<i64: 32, 1024>}, {pipeline_mode = #tpu.pipeline_mode<synchronous>, transform_indices = @transform_2, window_bounds = array<i64: 1, 1024>}, {pipeline_mode = #tpu.pipeline_mode<synchronous>, transform_indices = @transform_3, window_bounds = array<i64: 1024, 512>}, {pipeline_mode = #tpu.pipeline_mode<synchronous>, transform_indices = @transform_4, window_bounds = array<i64: 1, 512>}, {pipeline_mode = #tpu.pipeline_mode<synchronous>, transform_indices = @transform_5, window_bounds = array<i64: 512, 128>}, {pipeline_mode = #tpu.pipeline_mode<synchronous>, transform_indices = @transform_6, window_bounds = array<i64: 1, 128>}, {transform_indices = @transform_7, window_bounds = array<i64: 2>}, {transform_indices = @transform_8, window_bounds = array<i64: 8, 128>}]} {
    %c0 = arith.constant 0 : index
    %0 = memref.load %arg8[%c0] : memref<2xf32, #tpu.memory_space<smem>>
    %c1 = arith.constant 1 : index
    %1 = memref.load %arg8[%c1] : memref<2xf32, #tpu.memory_space<smem>>
    %c0_0 = arith.constant 0 : index
    %c0_1 = arith.constant 0 : index
    %2 = vector.load %arg1[%c0_0, %c0_1] : memref<8x32xf32, #tpu.memory_space<vmem>>, vector<8x32xf32>
    %c0_2 = arith.constant 0 : index
    %c0_3 = arith.constant 0 : index
    %3 = vector.load %arg2[%c0_2, %c0_3] : memref<32x1024xf32, #tpu.memory_space<vmem>>, vector<32x1024xf32>
    %cst = arith.constant dense<0.000000e+00> : vector<8x1024xf32>
    %4 = tpu.matmul %2, %3, %cst {dimension_numbers = #tpu.dot_dimension_numbers<[1], [0], [0], [1], [0, 0, 1, 1], [], []>} : vector<8x32xf32>, vector<32x1024xf32>, vector<8x1024xf32> -> vector<8x1024xf32>
    %c0_4 = arith.constant 0 : index
    %c0_5 = arith.constant 0 : index
    %5 = vector.load %arg3[%c0_4, %c0_5] : memref<1x1024xf32, #tpu.memory_space<vmem>>, vector<1x1024xf32>
    %6 = vector.broadcast %5 : vector<1x1024xf32> to vector<8x1024xf32>
    %7 = arith.addf %4, %6 : vector<8x1024xf32>
    %cst_6 = arith.constant 0.000000e+00 : f32
    %8 = vector.broadcast %cst_6 : f32 to vector<8x1024xf32>
    %9 = arith.cmpf oge, %7, %8 : vector<8x1024xf32>
    %10 = vector.broadcast %0 : f32 to vector<8x1024xf32>
    %11 = arith.mulf %10, %7 : vector<8x1024xf32>
    %12 = arith.select %9, %7, %11 : vector<8x1024xi1>, vector<8x1024xf32>
    %c0_7 = arith.constant 0 : index
    %c0_8 = arith.constant 0 : index
    %13 = vector.load %arg4[%c0_7, %c0_8] : memref<1024x512xf32, #tpu.memory_space<vmem>>, vector<1024x512xf32>
    %cst_9 = arith.constant dense<0.000000e+00> : vector<8x512xf32>
    %14 = tpu.matmul %12, %13, %cst_9 {dimension_numbers = #tpu.dot_dimension_numbers<[1], [0], [0], [1], [0, 0, 1, 1], [], []>} : vector<8x1024xf32>, vector<1024x512xf32>, vector<8x512xf32> -> vector<8x512xf32>
    %c0_10 = arith.constant 0 : index
    %c0_11 = arith.constant 0 : index
    %15 = vector.load %arg5[%c0_10, %c0_11] : memref<1x512xf32, #tpu.memory_space<vmem>>, vector<1x512xf32>
    %16 = vector.broadcast %15 : vector<1x512xf32> to vector<8x512xf32>
    %17 = arith.addf %14, %16 : vector<8x512xf32>
    %cst_12 = arith.constant 0.000000e+00 : f32
    %18 = vector.broadcast %cst_12 : f32 to vector<8x512xf32>
    %19 = arith.cmpf oge, %17, %18 : vector<8x512xf32>
    %20 = vector.broadcast %1 : f32 to vector<8x512xf32>
    %21 = arith.mulf %20, %17 : vector<8x512xf32>
    %22 = arith.select %19, %17, %21 : vector<8x512xi1>, vector<8x512xf32>
    %c0_13 = arith.constant 0 : index
    %c0_14 = arith.constant 0 : index
    %23 = vector.load %arg6[%c0_13, %c0_14] : memref<512x128xf32, #tpu.memory_space<vmem>>, vector<512x128xf32>
    %cst_15 = arith.constant dense<0.000000e+00> : vector<8x128xf32>
    %24 = tpu.matmul %22, %23, %cst_15 {dimension_numbers = #tpu.dot_dimension_numbers<[1], [0], [0], [1], [0, 0, 1, 1], [], []>} : vector<8x512xf32>, vector<512x128xf32>, vector<8x128xf32> -> vector<8x128xf32>
    %c0_16 = arith.constant 0 : index
    %c0_17 = arith.constant 0 : index
    %25 = vector.load %arg7[%c0_16, %c0_17] : memref<1x128xf32, #tpu.memory_space<vmem>>, vector<1x128xf32>
    %26 = vector.broadcast %25 : vector<1x128xf32> to vector<8x128xf32>
    %27 = arith.addf %24, %26 : vector<8x128xf32>
    %28 = math.tanh %27 : vector<8x128xf32>
    %c0_18 = arith.constant 0 : index
    %c0_19 = arith.constant 0 : index
    %29 = vector.load %arg9[%c0_18, %c0_19] : memref<8x128xf32, #tpu.memory_space<vmem>>, vector<8x128xf32>
    tpu.vector_store %arg9[%c0_18, %c0_19], %28 {strides = array<i32>} : memref<8x128xf32, #tpu.memory_space<vmem>>, vector<8x128xf32>,
    return
  }
  func.func @transform_0(%arg0: i32) -> (i32, i32) {
    %c0_i32 = arith.constant 0 : i32
    %c0_i32_0 = arith.constant 0 : i32
    return %arg0, %c0_i32 : i32, i32
  }
  func.func @transform_1(%arg0: i32) -> (i32, i32) {
    %c0_i32 = arith.constant 0 : i32
    %c0_i32_0 = arith.constant 0 : i32
    %c0_i32_1 = arith.constant 0 : i32
    return %c0_i32, %c0_i32_0 : i32, i32
  }
  func.func @transform_2(%arg0: i32) -> (i32, i32) {
    %c0_i32 = arith.constant 0 : i32
    %c0_i32_0 = arith.constant 0 : i32
    %c0_i32_1 = arith.constant 0 : i32
    return %c0_i32, %c0_i32_0 : i32, i32
  }
  func.func @transform_3(%arg0: i32) -> (i32, i32) {
    %c0_i32 = arith.constant 0 : i32
    %c0_i32_0 = arith.constant 0 : i32
    %c0_i32_1 = arith.constant 0 : i32
    return %c0_i32, %c0_i32_0 : i32, i32
  }
  func.func @transform_4(%arg0: i32) -> (i32, i32) {
    %c0_i32 = arith.constant 0 : i32
    %c0_i32_0 = arith.constant 0 : i32
    %c0_i32_1 = arith.constant 0 : i32
    return %c0_i32, %c0_i32_0 : i32, i32
  }
  func.func @transform_5(%arg0: i32) -> (i32, i32) {
    %c0_i32 = arith.constant 0 : i32
    %c0_i32_0 = arith.constant 0 : i32
    %c0_i32_1 = arith.constant 0 : i32
    return %c0_i32, %c0_i32_0 : i32, i32
  }
  func.func @transform_6(%arg0: i32) -> (i32, i32) {
    %c0_i32 = arith.constant 0 : i32
    %c0_i32_0 = arith.constant 0 : i32
    %c0_i32_1 = arith.constant 0 : i32
    return %c0_i32, %c0_i32_0 : i32, i32
  }
  func.func @transform_7(%arg0: i32) -> i32 {
    %c0_i32 = arith.constant 0 : i32
    %c0_i32_0 = arith.constant 0 : i32
    return %c0_i32 : i32
  }
  func.func @transform_8(%arg0: i32) -> (i32, i32) {
    %c0_i32 = arith.constant 0 : i32
    %c0_i32_0 = arith.constant 0 : i32
    return %arg0, %c0_i32 : i32, i32
  }
}

</mosaic_0001>

<llo_original>
// kernel: tpu_custom_call.1
$region0: #{tpu_custom_call.1}
  #allocation0 [shape = 'u32[]', space=smem, size = 0x4, offset = 0x4, fixed_abs, tag = 'smem constant byte address 0x4 - core index']
  #allocation1 [shape = 'u32[72,128]{1,0:T(1,128)}', space=vmem, size = 0x9000, scoped, tag = 'internal scratch']
  %s0 = inlined_call_operand.hbm [shape: f32[8,32], index: 0, kind: input, shape index: {}]
  %s1 = inlined_call_operand.hbm [shape: f32[32,1024], index: 1, kind: input, shape index: {}]
  %s2 = inlined_call_operand.hbm [shape: f32[1,1024], index: 2, kind: input, shape index: {}]
  %s3 = inlined_call_operand.hbm [shape: f32[1024,512], index: 3, kind: input, shape index: {}]
  %s4 = inlined_call_operand.hbm [shape: f32[1,512], index: 4, kind: input, shape index: {}]
  %s5 = inlined_call_operand.hbm [shape: f32[512,128], index: 5, kind: input, shape index: {}]
  %s6 = inlined_call_operand.hbm [shape: f32[1,128], index: 6, kind: input, shape index: {}]
  %s7 = inlined_call_operand.hbm [shape: f32[2], index: 7, kind: input, shape index: {}]
  %s8 = inlined_call_operand.hbm [shape: f32[8,128], index: 8, kind: output, shape index: {}]
  %s9 = sld [smem:[#allocation0]]
  $region74: #{tpu_custom_call.1} parent=0
    _
  %s11 = ssub.s32 1, %s9
  %s12 = scalar_select 0, %s11, %s9
  $region1: #{tpu_custom_call.1} parent=0
    #allocation2 [shape = 'u8[4096]{0}', space=vmem, size = 0x1000, scoped, tag = 'input window, operand 0, single buffered']
    #allocation3 [shape = 's32[1]{0}', space=sflag, size = 0x4, scoped, tag = 'scoped memory for tpu_custom_call.1']
    #allocation4 [shape = 's32[1]{0}', space=sflag, size = 0x4, scoped, tag = 'scoped memory for tpu_custom_call.1']
    #allocation5 [shape = 's32[1]{0}', space=sflag, size = 0x4, scoped, tag = 'scoped memory for tpu_custom_call.1']
    #allocation6 [shape = 'u8[131072]{0}', space=vmem, size = 0x20000, scoped, tag = 'input window, operand 1, single buffered']
    #allocation7 [shape = 's32[1]{0}', space=sflag, size = 0x4, scoped, tag = 'scoped memory for tpu_custom_call.1']
    #allocation8 [shape = 'u8[4096]{0}', space=vmem, size = 0x1000, scoped, tag = 'input window, operand 2, single buffered']
    #allocation9 [shape = 'u8[2097152]{0}', space=vmem, size = 0x200000, scoped, tag = 'input window, operand 3, single buffered']
    #allocation10 [shape = 's32[1]{0}', space=sflag, size = 0x4, scoped, tag = 'scoped memory for tpu_custom_call.1']
    #allocation11 [shape = 'u8[2048]{0}', space=vmem, size = 0x800, scoped, tag = 'input window, operand 4, single buffered']
    #allocation12 [shape = 'u8[262144]{0}', space=vmem, size = 0x40000, scoped, tag = 'input window, operand 5, single buffered']
    #allocation13 [shape = 's32[1]{0}', space=sflag, size = 0x4, scoped, tag = 'scoped memory for tpu_custom_call.1']
    #allocation14 [shape = 'u8[512]{0}', space=vmem, size = 0x400, scoped, tag = 'input window, operand 6, single buffered']
    #allocation15 [shape = 'u8[512]{0}', space=smem, size = 0x200, scoped, tag = 'input window, operand 7, single buffered']
    #allocation16 [shape = 'u8[4096]{0}', space=vmem, size = 0x1000, scoped, tag = 'output window, operand 0, single buffered']
    %13 = vsyncpa [#allocation3], 0
    %14 = vsyncpa [#allocation7], 0
    %15 = vsyncpa [#allocation10], 0
    %16 = vsyncpa [#allocation13], 0
    %17 = vsyncpa [#allocation5], 0
    %18 = vsyncpa [#allocation4], 0
    // Predicated region
    $region2: #{tpu_custom_call.1} parent=1 // pred_check
      _
    $region3: #{tpu_custom_call.1} parent=1 // pred_check_branch
      %20 = sbr.rel (0) target = $region5
    $region4: #{tpu_custom_call.1} parent=1 // pred_region
      %22 = vsyncadd [#allocation3], 0
      %s24 = sshll.u32 %s0, 4
      %s25 = int_to_ptr.hbm [resolvable:$true] %s24
      %s26 = sshll.u32 [#allocation2], 4
      %s27 = int_to_ptr.vmem [resolvable:$true] %s26
      %29 = dma.hbm_to_vmem [thread:$0]  %s25, 128, %s27, [#allocation3]
    $region5: #{tpu_custom_call.1} parent=1 // pred_fallthru
      _
    // Predicated region
    $region6: #{tpu_custom_call.1} parent=1 // pred_check
      _
    $region7: #{tpu_custom_call.1} parent=1 // pred_check_branch
      %31 = sbr.rel (0) target = $region9
    $region8: #{tpu_custom_call.1} parent=1 // pred_region
      %33 = vsyncadd [#allocation7], 0
      %s34 = sshll.u32 %s1, 4
      %s35 = int_to_ptr.hbm [resolvable:$true] %s34
      %s36 = sshll.u32 [#allocation6], 4
      %s37 = int_to_ptr.vmem [resolvable:$true] %s36
      %42 = dma.hbm_to_vmem [thread:$0]  %s35, 4096, %s37, [#allocation7], 1024, 1024, 64
    $region9: #{tpu_custom_call.1} parent=1 // pred_fallthru
      _
    // Predicated region
    $region10: #{tpu_custom_call.1} parent=1 // pred_check
      _
    $region11: #{tpu_custom_call.1} parent=1 // pred_check_branch
      %44 = sbr.rel (0) target = $region13
    $region12: #{tpu_custom_call.1} parent=1 // pred_region
      %46 = vsyncadd [#allocation7], 0
      %s48 = sshll.u32 %s2, 4
      %s49 = int_to_ptr.hbm [resolvable:$true] %s48
      %s50 = sshll.u32 [#allocation8], 4
      %s51 = int_to_ptr.vmem [resolvable:$true] %s50
      %53 = dma.hbm_to_vmem [thread:$0]  %s49, 128, %s51, [#allocation7]
    $region13: #{tpu_custom_call.1} parent=1 // pred_fallthru
      _
    // Predicated region
    $region14: #{tpu_custom_call.1} parent=1 // pred_check
      _
    $region15: #{tpu_custom_call.1} parent=1 // pred_check_branch
      %55 = sbr.rel (0) target = $region17
    $region16: #{tpu_custom_call.1} parent=1 // pred_region
      %57 = vsyncadd [#allocation10], 0
      %s58 = sshll.u32 %s3, 4
      %s59 = int_to_ptr.hbm [resolvable:$true] %s58
      %s60 = sshll.u32 [#allocation9], 4
      %s61 = int_to_ptr.vmem [resolvable:$true] %s60
      %66 = dma.hbm_to_vmem [thread:$0]  %s59, 65536, %s61, [#allocation10], 512, 512, 32
    $region17: #{tpu_custom_call.1} parent=1 // pred_fallthru
      _
    // Predicated region
    $region18: #{tpu_custom_call.1} parent=1 // pred_check
      _
    $region19: #{tpu_custom_call.1} parent=1 // pred_check_branch
      %68 = sbr.rel (0) target = $region21
    $region20: #{tpu_custom_call.1} parent=1 // pred_region
      %70 = vsyncadd [#allocation10], 0
      %s72 = sshll.u32 %s4, 4
      %s73 = int_to_ptr.hbm [resolvable:$true] %s72
      %s74 = sshll.u32 [#allocation11], 4
      %s75 = int_to_ptr.vmem [resolvable:$true] %s74
      %77 = dma.hbm_to_vmem [thread:$0]  %s73, 64, %s75, [#allocation10]
    $region21: #{tpu_custom_call.1} parent=1 // pred_fallthru
      _
    // Predicated region
    $region22: #{tpu_custom_call.1} parent=1 // pred_check
      _
    $region23: #{tpu_custom_call.1} parent=1 // pred_check_branch
      %79 = sbr.rel (0) target = $region25
    $region24: #{tpu_custom_call.1} parent=1 // pred_region
      %81 = vsyncadd [#allocation13], 0
      %s82 = sshll.u32 %s5, 4
      %s83 = int_to_ptr.hbm [resolvable:$true] %s82
      %s84 = sshll.u32 [#allocation12], 4
      %s85 = int_to_ptr.vmem [resolvable:$true] %s84
      %90 = dma.hbm_to_vmem [thread:$0]  %s83, 8192, %s85, [#allocation13], 128, 128, 8
    $region25: #{tpu_custom_call.1} parent=1 // pred_fallthru
      _
    // Predicated region
    $region26: #{tpu_custom_call.1} parent=1 // pred_check
      _
    $region27: #{tpu_custom_call.1} parent=1 // pred_check_branch
      %92 = sbr.rel (0) target = $region29
    $region28: #{tpu_custom_call.1} parent=1 // pred_region
      %94 = vsyncadd [#allocation13], 0
      %s96 = sshll.u32 %s6, 4
      %s97 = int_to_ptr.hbm [resolvable:$true] %s96
      %s98 = sshll.u32 [#allocation14], 4
      %s99 = int_to_ptr.vmem [resolvable:$true] %s98
      %101 = dma.hbm_to_vmem [thread:$0]  %s97, 16, %s99, [#allocation13]
    $region29: #{tpu_custom_call.1} parent=1 // pred_fallthru
      _
    // Predicated region
    $region30: #{tpu_custom_call.1} parent=1 // pred_check
      _
    $region31: #{tpu_custom_call.1} parent=1 // pred_check_branch
      %103 = sbr.rel (0) target = $region33
    $region32: #{tpu_custom_call.1} parent=1 // pred_region
      %105 = vsyncadd [#allocation5], 0
      %s107 = sshll.u32 %s7, 4
      %s108 = int_to_ptr.hbm [resolvable:$true] %s107
      %110 = dma.hbm_to_smem %s108, 16, [#allocation15], [#allocation5]
    $region33: #{tpu_custom_call.1} parent=1 // pred_fallthru
      _
    // Predicated region
    $region34: #{tpu_custom_call.1} parent=1 // pred_check
      _
    $region35: #{tpu_custom_call.1} parent=1 // pred_check_branch
      %112 = sbr.rel (0) target = $region37
    $region36: #{tpu_custom_call.1} parent=1 // pred_region
      %114 = dma.done [#allocation3], 128
    $region37: #{tpu_custom_call.1} parent=1 // pred_fallthru
      _
    // Predicated region
    $region38: #{tpu_custom_call.1} parent=1 // pred_check
      _
    $region39: #{tpu_custom_call.1} parent=1 // pred_check_branch
      %116 = sbr.rel (0) target = $region41
    $region40: #{tpu_custom_call.1} parent=1 // pred_region
      %118 = dma.done [#allocation7], 4096
    $region41: #{tpu_custom_call.1} parent=1 // pred_fallthru
      _
    // Predicated region
    $region42: #{tpu_custom_call.1} parent=1 // pred_check
      _
    $region43: #{tpu_custom_call.1} parent=1 // pred_check_branch
      %120 = sbr.rel (0) target = $region45
    $region44: #{tpu_custom_call.1} parent=1 // pred_region
      %122 = dma.done [#allocation7], 128
    $region45: #{tpu_custom_call.1} parent=1 // pred_fallthru
      _
    // Predicated region
    $region46: #{tpu_custom_call.1} parent=1 // pred_check
      _
    $region47: #{tpu_custom_call.1} parent=1 // pred_check_branch
      %124 = sbr.rel (0) target = $region49
    $region48: #{tpu_custom_call.1} parent=1 // pred_region
      %126 = dma.done [#allocation10], 65536
    $region49: #{tpu_custom_call.1} parent=1 // pred_fallthru
      _
    // Predicated region
    $region50: #{tpu_custom_call.1} parent=1 // pred_check
      _
    $region51: #{tpu_custom_call.1} parent=1 // pred_check_branch
      %128 = sbr.rel (0) target = $region53
    $region52: #{tpu_custom_call.1} parent=1 // pred_region
      %130 = dma.done [#allocation10], 64
    $region53: #{tpu_custom_call.1} parent=1 // pred_fallthru
      _
    // Predicated region
    $region54: #{tpu_custom_call.1} parent=1 // pred_check
      _
    $region55: #{tpu_custom_call.1} parent=1 // pred_check_branch
      %132 = sbr.rel (0) target = $region57
    $region56: #{tpu_custom_call.1} parent=1 // pred_region
      %134 = dma.done [#allocation13], 8192
    $region57: #{tpu_custom_call.1} parent=1 // pred_fallthru
      _
    // Predicated region
    $region58: #{tpu_custom_call.1} parent=1 // pred_check
      _
    $region59: #{tpu_custom_call.1} parent=1 // pred_check_branch
      %136 = sbr.rel (0) target = $region61
    $region60: #{tpu_custom_call.1} parent=1 // pred_region
      %138 = dma.done [#allocation13], 16
    $region61: #{tpu_custom_call.1} parent=1 // pred_fallthru
      _
    // Predicated region
    $region62: #{tpu_custom_call.1} parent=1 // pred_check
      _
    $region63: #{tpu_custom_call.1} parent=1 // pred_check_branch
      %140 = sbr.rel (0) target = $region65
    $region64: #{tpu_custom_call.1} parent=1 // pred_region
      %142 = dma.done [#allocation5], 16
    $region65: #{tpu_custom_call.1} parent=1 // pred_fallthru
      _
    %143 = sfence
    %s144 = sld [smem:[#allocation15]]
    %s145 = sld [smem:[#allocation15 + $0x1]]
    %v146 = vld [vmem:[#allocation2] sm:$0xff]
    %v147 = vld [vmem:[#allocation6] sm:$0xff]
    %v148 = vld [vmem:[#allocation6 + $0x8] sm:$0xff]
    %v149 = vld [vmem:[#allocation6 + $0x10] sm:$0xff]
    %v150 = vld [vmem:[#allocation6 + $0x18] sm:$0xff]
    %v151 = vld [vmem:[#allocation6 + $0x20] sm:$0xff]
    %v152 = vld [vmem:[#allocation6 + $0x28] sm:$0xff]
    %v153 = vld [vmem:[#allocation6 + $0x30] sm:$0xff]
    %v154 = vld [vmem:[#allocation6 + $0x38] sm:$0xff]
    %v155 = vld [vmem:[#allocation6 + $0x40] sm:$0xff]
    %v156 = vld [vmem:[#allocation6 + $0x48] sm:$0xff]
    %v157 = vld [vmem:[#allocation6 + $0x50] sm:$0xff]
    %v158 = vld [vmem:[#allocation6 + $0x58] sm:$0xff]
    %v159 = vld [vmem:[#allocation6 + $0x60] sm:$0xff]
    %v160 = vld [vmem:[#allocation6 + $0x68] sm:$0xff]
    %v161 = vld [vmem:[#allocation6 + $0x70] sm:$0xff]
    %v162 = vld [vmem:[#allocation6 + $0x78] sm:$0xff]
    %v163 = vld [vmem:[#allocation6 + $0x80] sm:$0xff]
    %v164 = vld [vmem:[#allocation6 + $0x88] sm:$0xff]
    %v165 = vld [vmem:[#allocation6 + $0x90] sm:$0xff]
    %v166 = vld [vmem:[#allocation6 + $0x98] sm:$0xff]
    %v167 = vld [vmem:[#allocation6 + $0xa0] sm:$0xff]
    %v168 = vld [vmem:[#allocation6 + $0xa8] sm:$0xff]
    %v169 = vld [vmem:[#allocation6 + $0xb0] sm:$0xff]
    %v170 = vld [vmem:[#allocation6 + $0xb8] sm:$0xff]
    %v171 = vld [vmem:[#allocation6 + $0xc0] sm:$0xff]
    %v172 = vld [vmem:[#allocation6 + $0xc8] sm:$0xff]
    %v173 = vld [vmem:[#allocation6 + $0xd0] sm:$0xff]
    %v174 = vld [vmem:[#allocation6 + $0xd8] sm:$0xff]
    %v175 = vld [vmem:[#allocation6 + $0xe0] sm:$0xff]
    %v176 = vld [vmem:[#allocation6 + $0xe8] sm:$0xff]
    %v177 = vld [vmem:[#allocation6 + $0xf0] sm:$0xff]
    %v178 = vld [vmem:[#allocation6 + $0xf8] sm:$0xff]
    %v179 = vld [vmem:[#allocation8] sm:$0xff]
    %v181 = vperm.slane %v179, 0
    %v182 = vperm.slane %v179, 1
    %v183 = vperm.slane %v179, 2
    %v184 = vperm.slane %v179, 3
    %v185 = vperm.slane %v179, 4
    %v186 = vperm.slane %v179, 5
    %v187 = vperm.slane %v179, 6
    %v188 = vperm.slane %v179, 7
    %vm197 = vcmask 261120
    %v199 = vsel %vm197, %v146, 0
    %201 = vmatpush.msra.mxu0 0.0
    %202 = vmatpush.msra.mxu0 0.0
    %203 = vmatpush.msra.mxu0 0.0
    %204 = vmatpush.msra.mxu0 0.0
    %205 = vmatpush.msra.mxu0 0.0
    %206 = vmatpush.msra.mxu0 0.0
    %207 = vmatpush.msra.mxu0 0.0
    %208 = vmatpush.msra.mxu0 0.0
    %209 = vmatpush.msra.mxu0 0.0
    %210 = vmatpush.msra.mxu0 0.0
    %211 = vmatpush.msra.mxu0 0.0
    %212 = vmatpush.msra.mxu0 0.0
    %213 = vmatpush.msra.mxu0 %v171
    %214 = vmatpush.msra.mxu0 %v163
    %215 = vmatpush.msra.mxu0 %v155
    %216 = vmatpush.msra.mxu0 %v147
    %217 = vmatmul.f32.gmra.mxu0 %v199
    %v218 = vpop.f32.mrf.mxu0
    %v219 = vadd.f32 %v181, %v218
    %220 = vdwg.mxu0
    %221 = vmatpush.msra.mxu0 0.0
    %222 = vmatpush.msra.mxu0 0.0
    %223 = vmatpush.msra.mxu0 0.0
    %224 = vmatpush.msra.mxu0 0.0
    %225 = vmatpush.msra.mxu0 0.0
    %226 = vmatpush.msra.mxu0 0.0
    %227 = vmatpush.msra.mxu0 0.0
    %228 = vmatpush.msra.mxu0 0.0
    %229 = vmatpush.msra.mxu0 0.0
    %230 = vmatpush.msra.mxu0 0.0
    %231 = vmatpush.msra.mxu0 0.0
    %232 = vmatpush.msra.mxu0 0.0
    %233 = vmatpush.msra.mxu0 %v172
    %234 = vmatpush.msra.mxu0 %v164
    %235 = vmatpush.msra.mxu0 %v156
    %236 = vmatpush.msra.mxu0 %v148
    %237 = vmatmul.f32.gmra.mxu0 %v199
    %v238 = vpop.f32.mrf.mxu0
    %v239 = vadd.f32 %v182, %v238
    %240 = vdwg.mxu0
    %241 = vmatpush.msra.mxu0 0.0
    %242 = vmatpush.msra.mxu0 0.0
    %243 = vmatpush.msra.mxu0 0.0
    %244 = vmatpush.msra.mxu0 0.0
    %245 = vmatpush.msra.mxu0 0.0
    %246 = vmatpush.msra.mxu0 0.0
    %247 = vmatpush.msra.mxu0 0.0
    %248 = vmatpush.msra.mxu0 0.0
    %249 = vmatpush.msra.mxu0 0.0
    %250 = vmatpush.msra.mxu0 0.0
    %251 = vmatpush.msra.mxu0 0.0
    %252 = vmatpush.msra.mxu0 0.0
    %253 = vmatpush.msra.mxu0 %v173
    %254 = vmatpush.msra.mxu0 %v165
    %255 = vmatpush.msra.mxu0 %v157
    %256 = vmatpush.msra.mxu0 %v149
    %257 = vmatmul.f32.gmra.mxu0 %v199
    %v258 = vpop.f32.mrf.mxu0
    %v259 = vadd.f32 %v183, %v258
    %260 = vdwg.mxu0
    %261 = vmatpush.msra.mxu0 0.0
    %262 = vmatpush.msra.mxu0 0.0
    %263 = vmatpush.msra.mxu0 0.0
    %264 = vmatpush.msra.mxu0 0.0
    %265 = vmatpush.msra.mxu0 0.0
    %266 = vmatpush.msra.mxu0 0.0
    %267 = vmatpush.msra.mxu0 0.0
    %268 = vmatpush.msra.mxu0 0.0
    %269 = vmatpush.msra.mxu0 0.0
    %270 = vmatpush.msra.mxu0 0.0
    %271 = vmatpush.msra.mxu0 0.0
    %272 = vmatpush.msra.mxu0 0.0
    %273 = vmatpush.msra.mxu0 %v174
    %274 = vmatpush.msra.mxu0 %v166
    %275 = vmatpush.msra.mxu0 %v158
    %276 = vmatpush.msra.mxu0 %v150
    %277 = vmatmul.f32.gmra.mxu0 %v199
    %v278 = vpop.f32.mrf.mxu0
    %v279 = vadd.f32 %v184, %v278
    %280 = vdwg.mxu0
    %281 = vmatpush.msra.mxu0 0.0
    %282 = vmatpush.msra.mxu0 0.0
    %283 = vmatpush.msra.mxu0 0.0
    %284 = vmatpush.msra.mxu0 0.0
    %285 = vmatpush.msra.mxu0 0.0
    %286 = vmatpush.msra.mxu0 0.0
    %287 = vmatpush.msra.mxu0 0.0
    %288 = vmatpush.msra.mxu0 0.0
    %289 = vmatpush.msra.mxu0 0.0
    %290 = vmatpush.msra.mxu0 0.0
    %291 = vmatpush.msra.mxu0 0.0
    %292 = vmatpush.msra.mxu0 0.0
    %293 = vmatpush.msra.mxu0 %v175
    %294 = vmatpush.msra.mxu0 %v167
    %295 = vmatpush.msra.mxu0 %v159
    %296 = vmatpush.msra.mxu0 %v151
    %297 = vmatmul.f32.gmra.mxu0 %v199
    %v298 = vpop.f32.mrf.mxu0
    %v299 = vadd.f32 %v185, %v298
    %300 = vdwg.mxu0
    %301 = vmatpush.msra.mxu0 0.0
    %302 = vmatpush.msra.mxu0 0.0
    %303 = vmatpush.msra.mxu0 0.0
    %304 = vmatpush.msra.mxu0 0.0
    %305 = vmatpush.msra.mxu0 0.0
    %306 = vmatpush.msra.mxu0 0.0
    %307 = vmatpush.msra.mxu0 0.0
    %308 = vmatpush.msra.mxu0 0.0
    %309 = vmatpush.msra.mxu0 0.0
    %310 = vmatpush.msra.mxu0 0.0
    %311 = vmatpush.msra.mxu0 0.0
    %312 = vmatpush.msra.mxu0 0.0
    %313 = vmatpush.msra.mxu0 %v176
    %314 = vmatpush.msra.mxu0 %v168
    %315 = vmatpush.msra.mxu0 %v160
    %316 = vmatpush.msra.mxu0 %v152
    %317 = vmatmul.f32.gmra.mxu0 %v199
    %v318 = vpop.f32.mrf.mxu0
    %v319 = vadd.f32 %v186, %v318
    %320 = vdwg.mxu0
    %321 = vmatpush.msra.mxu0 0.0
    %322 = vmatpush.msra.mxu0 0.0
    %323 = vmatpush.msra.mxu0 0.0
    %324 = vmatpush.msra.mxu0 0.0
    %325 = vmatpush.msra.mxu0 0.0
    %326 = vmatpush.msra.mxu0 0.0
    %327 = vmatpush.msra.mxu0 0.0
    %328 = vmatpush.msra.mxu0 0.0
    %329 = vmatpush.msra.mxu0 0.0
    %330 = vmatpush.msra.mxu0 0.0
    %331 = vmatpush.msra.mxu0 0.0
    %332 = vmatpush.msra.mxu0 0.0
    %333 = vmatpush.msra.mxu0 %v177
    %334 = vmatpush.msra.mxu0 %v169
    %335 = vmatpush.msra.mxu0 %v161
    %336 = vmatpush.msra.mxu0 %v153
    %337 = vmatmul.f32.gmra.mxu0 %v199
    %v338 = vpop.f32.mrf.mxu0
    %v339 = vadd.f32 %v187, %v338
    %340 = vdwg.mxu0
    %341 = vmatpush.msra.mxu0 0.0
    %342 = vmatpush.msra.mxu0 0.0
    %343 = vmatpush.msra.mxu0 0.0
    %344 = vmatpush.msra.mxu0 0.0
    %345 = vmatpush.msra.mxu0 0.0
    %346 = vmatpush.msra.mxu0 0.0
    %347 = vmatpush.msra.mxu0 0.0
    %348 = vmatpush.msra.mxu0 0.0
    %349 = vmatpush.msra.mxu0 0.0
    %350 = vmatpush.msra.mxu0 0.0
    %351 = vmatpush.msra.mxu0 0.0
    %352 = vmatpush.msra.mxu0 0.0
    %353 = vmatpush.msra.mxu0 %v178
    %354 = vmatpush.msra.mxu0 %v170
    %355 = vmatpush.msra.mxu0 %v162
    %356 = vmatpush.msra.mxu0 %v154
    %357 = vmatmul.f32.gmra.mxu0 %v199
    %v358 = vpop.f32.mrf.mxu0
    %v359 = vadd.f32 %v188, %v358
    %360 = vdwg.mxu0
    %vm361 = vcmp.ge.f32.partialorder %v219, 0.0
    %vm362 = vcmp.ge.f32.partialorder %v239, 0.0
    %vm363 = vcmp.ge.f32.partialorder %v259, 0.0
    %vm364 = vcmp.ge.f32.partialorder %v279, 0.0
    %vm365 = vcmp.ge.f32.partialorder %v299, 0.0
    %vm366 = vcmp.ge.f32.partialorder %v319, 0.0
    %vm367 = vcmp.ge.f32.partialorder %v339, 0.0
    %vm368 = vcmp.ge.f32.partialorder %v359, 0.0
    %v369 = vstv %s144
    %v370 = vmul.f32 %v369, %v219
    %v371 = vmul.f32 %v369, %v239
    %v372 = vmul.f32 %v369, %v259
    %v373 = vmul.f32 %v369, %v279
    %v374 = vmul.f32 %v369, %v299
    %v375 = vmul.f32 %v369, %v319
    %v376 = vmul.f32 %v369, %v339
    %v377 = vmul.f32 %v369, %v359
    %v378 = vsel %vm361, %v219, %v370
    %v379 = vsel %vm362, %v239, %v371
    %v380 = vsel %vm363, %v259, %v372
    %v381 = vsel %vm364, %v279, %v373
    %v382 = vsel %vm365, %v299, %v374
    %v383 = vsel %vm366, %v319, %v375
    %v384 = vsel %vm367, %v339, %v376
    %v385 = vsel %vm368, %v359, %v377
    %v386 = vld [vmem:[#allocation9] sm:$0xff]
    %v387 = vld [vmem:[#allocation9 + $0x8] sm:$0xff]
    %v388 = vld [vmem:[#allocation9 + $0x10] sm:$0xff]
    %v389 = vld [vmem:[#allocation9 + $0x18] sm:$0xff]
    %v390 = vld [vmem:[#allocation9 + $0x20] sm:$0xff]
    %v391 = vld [vmem:[#allocation9 + $0x28] sm:$0xff]
    %v392 = vld [vmem:[#allocation9 + $0x30] sm:$0xff]
    %v393 = vld [vmem:[#allocation9 + $0x38] sm:$0xff]
    %v394 = vld [vmem:[#allocation9 + $0x40] sm:$0xff]
    %v395 = vld [vmem:[#allocation9 + $0x48] sm:$0xff]
    %v396 = vld [vmem:[#allocation9 + $0x50] sm:$0xff]
    %v397 = vld [vmem:[#allocation9 + $0x58] sm:$0xff]
    %v398 = vld [vmem:[#allocation9 + $0x60] sm:$0xff]
    %v399 = vld [vmem:[#allocation9 + $0x68] sm:$0xff]
    %v400 = vld [vmem:[#allocation9 + $0x70] sm:$0xff]
    %v401 = vld [vmem:[#allocation9 + $0x78] sm:$0xff]
    %v402 = vld [vmem:[#allocation9 + $0x80] sm:$0xff]
    %v403 = vld [vmem:[#allocation9 + $0x88] sm:$0xff]
    %v404 = vld [vmem:[#allocation9 + $0x90] sm:$0xff]
    %v405 = vld [vmem:[#allocation9 + $0x98] sm:$0xff]
    %v406 = vld [vmem:[#allocation9 + $0xa0] sm:$0xff]
    %v407 = vld [vmem:[#allocation9 + $0xa8] sm:$0xff]
    %v408 = vld [vmem:[#allocation9 + $0xb0] sm:$0xff]
    %v409 = vld [vmem:[#allocation9 + $0xb8] sm:$0xff]
    %v410 = vld [vmem:[#allocation9 + $0xc0] sm:$0xff]
    %v411 = vld [vmem:[#allocation9 + $0xc8] sm:$0xff]
    %v412 = vld [vmem:[#allocation9 + $0xd0] sm:$0xff]
    %v413 = vld [vmem:[#allocation9 + $0xd8] sm:$0xff]
    %v414 = vld [vmem:[#allocation9 + $0xe0] sm:$0xff]
    %v415 = vld [vmem:[#allocation9 + $0xe8] sm:$0xff]
    %v416 = vld [vmem:[#allocation9 + $0xf0] sm:$0xff]
    %v417 = vld [vmem:[#allocation9 + $0xf8] sm:$0xff]
    %v418 = vld [vmem:[#allocation9 + $0x100] sm:$0xff]
    %v419 = vld [vmem:[#allocation9 + $0x108] sm:$0xff]
    %v420 = vld [vmem:[#allocation9 + $0x110] sm:$0xff]
    %v421 = vld [vmem:[#allocation9 + $0x118] sm:$0xff]
    %v422 = vld [vmem:[#allocation9 + $0x120] sm:$0xff]
    %v423 = vld [vmem:[#allocation9 + $0x128] sm:$0xff]
    %v424 = vld [vmem:[#allocation9 + $0x130] sm:$0xff]
    %v425 = vld [vmem:[#allocation9 + $0x138] sm:$0xff]
    %v426 = vld [vmem:[#allocation9 + $0x140] sm:$0xff]
    %v427 = vld [vmem:[#allocation9 + $0x148] sm:$0xff]
    %v428 = vld [vmem:[#allocation9 + $0x150] sm:$0xff]
    %v429 = vld [vmem:[#allocation9 + $0x158] sm:$0xff]
    %v430 = vld [vmem:[#allocation9 + $0x160] sm:$0xff]
    %v431 = vld [vmem:[#allocation9 + $0x168] sm:$0xff]
    %v432 = vld [vmem:[#allocation9 + $0x170] sm:$0xff]
    %v433 = vld [vmem:[#allocation9 + $0x178] sm:$0xff]
    %v434 = vld [vmem:[#allocation9 + $0x180] sm:$0xff]
    %v435 = vld [vmem:[#allocation9 + $0x188] sm:$0xff]
    %v436 = vld [vmem:[#allocation9 + $0x190] sm:$0xff]
    %v437 = vld [vmem:[#allocation9 + $0x198] sm:$0xff]
    %v438 = vld [vmem:[#allocation9 + $0x1a0] sm:$0xff]
    %v439 = vld [vmem:[#allocation9 + $0x1a8] sm:$0xff]
    %v440 = vld [vmem:[#allocation9 + $0x1b0] sm:$0xff]
    %v441 = vld [vmem:[#allocation9 + $0x1b8] sm:$0xff]
    %v442 = vld [vmem:[#allocation9 + $0x1c0] sm:$0xff]
    %v443 = vld [vmem:[#allocation9 + $0x1c8] sm:$0xff]
    %v444 = vld [vmem:[#allocation9 + $0x1d0] sm:$0xff]
    %v445 = vld [vmem:[#allocation9 + $0x1d8] sm:$0xff]
    %v446 = vld [vmem:[#allocation9 + $0x1e0] sm:$0xff]
    %v447 = vld [vmem:[#allocation9 + $0x1e8] sm:$0xff]
    %v448 = vld [vmem:[#allocation9 + $0x1f0] sm:$0xff]
    %v449 = vld [vmem:[#allocation9 + $0x1f8] sm:$0xff]
    %v450 = vld [vmem:[#allocation9 + $0x200] sm:$0xff]
    %v451 = vld [vmem:[#allocation9 + $0x208] sm:$0xff]
    %v452 = vld [vmem:[#allocation9 + $0x210] sm:$0xff]
    %v453 = vld [vmem:[#allocation9 + $0x218] sm:$0xff]
    %v454 = vld [vmem:[#allocation9 + $0x220] sm:$0xff]
    %v455 = vld [vmem:[#allocation9 + $0x228] sm:$0xff]
    %v456 = vld [vmem:[#allocation9 + $0x230] sm:$0xff]
    %v457 = vld [vmem:[#allocation9 + $0x238] sm:$0xff]
    %v458 = vld [vmem:[#allocation9 + $0x240] sm:$0xff]
    %v459 = vld [vmem:[#allocation9 + $0x248] sm:$0xff]
    %v460 = vld [vmem:[#allocation9 + $0x250] sm:$0xff]
    %v461 = vld [vmem:[#allocation9 + $0x258] sm:$0xff]
    %v462 = vld [vmem:[#allocation9 + $0x260] sm:$0xff]
    %v463 = vld [vmem:[#allocation9 + $0x268] sm:$0xff]
    %v464 = vld [vmem:[#allocation9 + $0x270] sm:$0xff]
    %v465 = vld [vmem:[#allocation9 + $0x278] sm:$0xff]
    %v466 = vld [vmem:[#allocation9 + $0x280] sm:$0xff]
    %v467 = vld [vmem:[#allocation9 + $0x288] sm:$0xff]
    %v468 = vld [vmem:[#allocation9 + $0x290] sm:$0xff]
    %v469 = vld [vmem:[#allocation9 + $0x298] sm:$0xff]
    %v470 = vld [vmem:[#allocation9 + $0x2a0] sm:$0xff]
    %v471 = vld [vmem:[#allocation9 + $0x2a8] sm:$0xff]
    %v472 = vld [vmem:[#allocation9 + $0x2b0] sm:$0xff]
    %v473 = vld [vmem:[#allocation9 + $0x2b8] sm:$0xff]
    %v474 = vld [vmem:[#allocation9 + $0x2c0] sm:$0xff]
    %v475 = vld [vmem:[#allocation9 + $0x2c8] sm:$0xff]
    %v476 = vld [vmem:[#allocation9 + $0x2d0] sm:$0xff]
    %v477 = vld [vmem:[#allocation9 + $0x2d8] sm:$0xff]
    %v478 = vld [vmem:[#allocation9 + $0x2e0] sm:$0xff]
    %v479 = vld [vmem:[#allocation9 + $0x2e8] sm:$0xff]
    %v480 = vld [vmem:[#allocation9 + $0x2f0] sm:$0xff]
    %v481 = vld [vmem:[#allocation9 + $0x2f8] sm:$0xff]
    %v482 = vld [vmem:[#allocation9 + $0x300] sm:$0xff]
    %v483 = vld [vmem:[#allocation9 + $0x308] sm:$0xff]
    %v484 = vld [vmem:[#allocation9 + $0x310] sm:$0xff]
    %v485 = vld [vmem:[#allocation9 + $0x318] sm:$0xff]
    %v486 = vld [vmem:[#allocation9 + $0x320] sm:$0xff]
    %v487 = vld [vmem:[#allocation9 + $0x328] sm:$0xff]
    %v488 = vld [vmem:[#allocation9 + $0x330] sm:$0xff]
    %v489 = vld [vmem:[#allocation9 + $0x338] sm:$0xff]
    %v490 = vld [vmem:[#allocation9 + $0x340] sm:$0xff]
    %v491 = vld [vmem:[#allocation9 + $0x348] sm:$0xff]
    %v492 = vld [vmem:[#allocation9 + $0x350] sm:$0xff]
    %v493 = vld [vmem:[#allocation9 + $0x358] sm:$0xff]
    %v494 = vld [vmem:[#allocation9 + $0x360] sm:$0xff]
    %v495 = vld [vmem:[#allocation9 + $0x368] sm:$0xff]
    %v496 = vld [vmem:[#allocation9 + $0x370] sm:$0xff]
    %v497 = vld [vmem:[#allocation9 + $0x378] sm:$0xff]
    %v498 = vld [vmem:[#allocation9 + $0x380] sm:$0xff]
    %v499 = vld [vmem:[#allocation9 + $0x388] sm:$0xff]
    %v500 = vld [vmem:[#allocation9 + $0x390] sm:$0xff]
    %v501 = vld [vmem:[#allocation9 + $0x398] sm:$0xff]
    %v502 = vld [vmem:[#allocation9 + $0x3a0] sm:$0xff]
    %v503 = vld [vmem:[#allocation9 + $0x3a8] sm:$0xff]
    %v504 = vld [vmem:[#allocation9 + $0x3b0] sm:$0xff]
    %v505 = vld [vmem:[#allocation9 + $0x3b8] sm:$0xff]
    %v506 = vld [vmem:[#allocation9 + $0x3c0] sm:$0xff]
    %v507 = vld [vmem:[#allocation9 + $0x3c8] sm:$0xff]
    %v508 = vld [vmem:[#allocation9 + $0x3d0] sm:$0xff]
    %v509 = vld [vmem:[#allocation9 + $0x3d8] sm:$0xff]
    %v510 = vld [vmem:[#allocation9 + $0x3e0] sm:$0xff]
    %v511 = vld [vmem:[#allocation9 + $0x3e8] sm:$0xff]
    %v512 = vld [vmem:[#allocation9 + $0x3f0] sm:$0xff]
    %v513 = vld [vmem:[#allocation9 + $0x3f8] sm:$0xff]
    %v514 = vld [vmem:[#allocation9 + $0x400] sm:$0xff]
    %v515 = vld [vmem:[#allocation9 + $0x408] sm:$0xff]
    %v516 = vld [vmem:[#allocation9 + $0x410] sm:$0xff]
    %v517 = vld [vmem:[#allocation9 + $0x418] sm:$0xff]
    %v518 = vld [vmem:[#allocation9 + $0x420] sm:$0xff]
    %v519 = vld [vmem:[#allocation9 + $0x428] sm:$0xff]
    %v520 = vld [vmem:[#allocation9 + $0x430] sm:$0xff]
    %v521 = vld [vmem:[#allocation9 + $0x438] sm:$0xff]
    %v522 = vld [vmem:[#allocation9 + $0x440] sm:$0xff]
    %v523 = vld [vmem:[#allocation9 + $0x448] sm:$0xff]
    %v524 = vld [vmem:[#allocation9 + $0x450] sm:$0xff]
    %v525 = vld [vmem:[#allocation9 + $0x458] sm:$0xff]
    %v526 = vld [vmem:[#allocation9 + $0x460] sm:$0xff]
    %v527 = vld [vmem:[#allocation9 + $0x468] sm:$0xff]
    %v528 = vld [vmem:[#allocation9 + $0x470] sm:$0xff]
    %v529 = vld [vmem:[#allocation9 + $0x478] sm:$0xff]
    %v530 = vld [vmem:[#allocation9 + $0x480] sm:$0xff]
    %v531 = vld [vmem:[#allocation9 + $0x488] sm:$0xff]
    %v532 = vld [vmem:[#allocation9 + $0x490] sm:$0xff]
    %v533 = vld [vmem:[#allocation9 + $0x498] sm:$0xff]
    %v534 = vld [vmem:[#allocation9 + $0x4a0] sm:$0xff]
    %v535 = vld [vmem:[#allocation9 + $0x4a8] sm:$0xff]
    %v536 = vld [vmem:[#allocation9 + $0x4b0] sm:$0xff]
    %v537 = vld [vmem:[#allocation9 + $0x4b8] sm:$0xff]
    %v538 = vld [vmem:[#allocation9 + $0x4c0] sm:$0xff]
    %v539 = vld [vmem:[#allocation9 + $0x4c8] sm:$0xff]
    %v540 = vld [vmem:[#allocation9 + $0x4d0] sm:$0xff]
    %v541 = vld [vmem:[#allocation9 + $0x4d8] sm:$0xff]
    %v542 = vld [vmem:[#allocation9 + $0x4e0] sm:$0xff]
    %v543 = vld [vmem:[#allocation9 + $0x4e8] sm:$0xff]
    %v544 = vld [vmem:[#allocation9 + $0x4f0] sm:$0xff]
    %v545 = vld [vmem:[#allocation9 + $0x4f8] sm:$0xff]
    %v546 = vld [vmem:[#allocation9 + $0x500] sm:$0xff]
    %v547 = vld [vmem:[#allocation9 + $0x508] sm:$0xff]
    %v548 = vld [vmem:[#allocation9 + $0x510] sm:$0xff]
    %v549 = vld [vmem:[#allocation9 + $0x518] sm:$0xff]
    %v550 = vld [vmem:[#allocation9 + $0x520] sm:$0xff]
    %v551 = vld [vmem:[#allocation9 + $0x528] sm:$0xff]
    %v552 = vld [vmem:[#allocation9 + $0x530] sm:$0xff]
    %v553 = vld [vmem:[#allocation9 + $0x538] sm:$0xff]
    %v554 = vld [vmem:[#allocation9 + $0x540] sm:$0xff]
    %v555 = vld [vmem:[#allocation9 + $0x548] sm:$0xff]
    %v556 = vld [vmem:[#allocation9 + $0x550] sm:$0xff]
    %v557 = vld [vmem:[#allocation9 + $0x558] sm:$0xff]
    %v558 = vld [vmem:[#allocation9 + $0x560] sm:$0xff]
    %v559 = vld [vmem:[#allocation9 + $0x568] sm:$0xff]
    %v560 = vld [vmem:[#allocation9 + $0x570] sm:$0xff]
    %v561 = vld [vmem:[#allocation9 + $0x578] sm:$0xff]
    %v562 = vld [vmem:[#allocation9 + $0x580] sm:$0xff]
    %v563 = vld [vmem:[#allocation9 + $0x588] sm:$0xff]
    %v564 = vld [vmem:[#allocation9 + $0x590] sm:$0xff]
    %v565 = vld [vmem:[#allocation9 + $0x598] sm:$0xff]
    %v566 = vld [vmem:[#allocation9 + $0x5a0] sm:$0xff]
    %v567 = vld [vmem:[#allocation9 + $0x5a8] sm:$0xff]
    %v568 = vld [vmem:[#allocation9 + $0x5b0] sm:$0xff]
    %v569 = vld [vmem:[#allocation9 + $0x5b8] sm:$0xff]
    %v570 = vld [vmem:[#allocation9 + $0x5c0] sm:$0xff]
    %v571 = vld [vmem:[#allocation9 + $0x5c8] sm:$0xff]
    %v572 = vld [vmem:[#allocation9 + $0x5d0] sm:$0xff]
    %v573 = vld [vmem:[#allocation9 + $0x5d8] sm:$0xff]
    %v574 = vld [vmem:[#allocation9 + $0x5e0] sm:$0xff]
    %v575 = vld [vmem:[#allocation9 + $0x5e8] sm:$0xff]
    %v576 = vld [vmem:[#allocation9 + $0x5f0] sm:$0xff]
    %v577 = vld [vmem:[#allocation9 + $0x5f8] sm:$0xff]
    %v578 = vld [vmem:[#allocation9 + $0x600] sm:$0xff]
    %v579 = vld [vmem:[#allocation9 + $0x608] sm:$0xff]
    %v580 = vld [vmem:[#allocation9 + $0x610] sm:$0xff]
    %v581 = vld [vmem:[#allocation9 + $0x618] sm:$0xff]
    %v582 = vld [vmem:[#allocation9 + $0x620] sm:$0xff]
    %v583 = vld [vmem:[#allocation9 + $0x628] sm:$0xff]
    %v584 = vld [vmem:[#allocation9 + $0x630] sm:$0xff]
    %v585 = vld [vmem:[#allocation9 + $0x638] sm:$0xff]
    %v586 = vld [vmem:[#allocation9 + $0x640] sm:$0xff]
    %v587 = vld [vmem:[#allocation9 + $0x648] sm:$0xff]
    %v588 = vld [vmem:[#allocation9 + $0x650] sm:$0xff]
    %v589 = vld [vmem:[#allocation9 + $0x658] sm:$0xff]
    %v590 = vld [vmem:[#allocation9 + $0x660] sm:$0xff]
    %v591 = vld [vmem:[#allocation9 + $0x668] sm:$0xff]
    %v592 = vld [vmem:[#allocation9 + $0x670] sm:$0xff]
    %v593 = vld [vmem:[#allocation9 + $0x678] sm:$0xff]
    %v594 = vld [vmem:[#allocation9 + $0x680] sm:$0xff]
    %v595 = vld [vmem:[#allocation9 + $0x688] sm:$0xff]
    %v596 = vld [vmem:[#allocation9 + $0x690] sm:$0xff]
    %v597 = vld [vmem:[#allocation9 + $0x698] sm:$0xff]
    %v598 = vld [vmem:[#allocation9 + $0x6a0] sm:$0xff]
    %v599 = vld [vmem:[#allocation9 + $0x6a8] sm:$0xff]
    %v600 = vld [vmem:[#allocation9 + $0x6b0] sm:$0xff]
    %v601 = vld [vmem:[#allocation9 + $0x6b8] sm:$0xff]
    %v602 = vld [vmem:[#allocation9 + $0x6c0] sm:$0xff]
    %v603 = vld [vmem:[#allocation9 + $0x6c8] sm:$0xff]
    %v604 = vld [vmem:[#allocation9 + $0x6d0] sm:$0xff]
    %v605 = vld [vmem:[#allocation9 + $0x6d8] sm:$0xff]
    %v606 = vld [vmem:[#allocation9 + $0x6e0] sm:$0xff]
    %v607 = vld [vmem:[#allocation9 + $0x6e8] sm:$0xff]
    %v608 = vld [vmem:[#allocation9 + $0x6f0] sm:$0xff]
    %v609 = vld [vmem:[#allocation9 + $0x6f8] sm:$0xff]
    %v610 = vld [vmem:[#allocation9 + $0x700] sm:$0xff]
    %v611 = vld [vmem:[#allocation9 + $0x708] sm:$0xff]
    %v612 = vld [vmem:[#allocation9 + $0x710] sm:$0xff]
    %v613 = vld [vmem:[#allocation9 + $0x718] sm:$0xff]
    %v614 = vld [vmem:[#allocation9 + $0x720] sm:$0xff]
    %v615 = vld [vmem:[#allocation9 + $0x728] sm:$0xff]
    %v616 = vld [vmem:[#allocation9 + $0x730] sm:$0xff]
    %v617 = vld [vmem:[#allocation9 + $0x738] sm:$0xff]
    %v618 = vld [vmem:[#allocation9 + $0x740] sm:$0xff]
    %v619 = vld [vmem:[#allocation9 + $0x748] sm:$0xff]
    %v620 = vld [vmem:[#allocation9 + $0x750] sm:$0xff]
    %v621 = vld [vmem:[#allocation9 + $0x758] sm:$0xff]
    %v622 = vld [vmem:[#allocation9 + $0x760] sm:$0xff]
    %v623 = vld [vmem:[#allocation9 + $0x768] sm:$0xff]
    %v624 = vld [vmem:[#allocation9 + $0x770] sm:$0xff]
    %v625 = vld [vmem:[#allocation9 + $0x778] sm:$0xff]
    %v626 = vld [vmem:[#allocation9 + $0x780] sm:$0xff]
    %v627 = vld [vmem:[#allocation9 + $0x788] sm:$0xff]
    %v628 = vld [vmem:[#allocation9 + $0x790] sm:$0xff]
    %v629 = vld [vmem:[#allocation9 + $0x798] sm:$0xff]
    %v630 = vld [vmem:[#allocation9 + $0x7a0] sm:$0xff]
    %v631 = vld [vmem:[#allocation9 + $0x7a8] sm:$0xff]
    %v632 = vld [vmem:[#allocation9 + $0x7b0] sm:$0xff]
    %v633 = vld [vmem:[#allocation9 + $0x7b8] sm:$0xff]
    %v634 = vld [vmem:[#allocation9 + $0x7c0] sm:$0xff]
    %v635 = vld [vmem:[#allocation9 + $0x7c8] sm:$0xff]
    %v636 = vld [vmem:[#allocation9 + $0x7d0] sm:$0xff]
    %v637 = vld [vmem:[#allocation9 + $0x7d8] sm:$0xff]
    %v638 = vld [vmem:[#allocation9 + $0x7e0] sm:$0xff]
    %v639 = vld [vmem:[#allocation9 + $0x7e8] sm:$0xff]
    %v640 = vld [vmem:[#allocation9 + $0x7f0] sm:$0xff]
    %v641 = vld [vmem:[#allocation9 + $0x7f8] sm:$0xff]
    %v642 = vld [vmem:[#allocation9 + $0x800] sm:$0xff]
    %v643 = vld [vmem:[#allocation9 + $0x808] sm:$0xff]
    %v644 = vld [vmem:[#allocation9 + $0x810] sm:$0xff]
    %v645 = vld [vmem:[#allocation9 + $0x818] sm:$0xff]
    %v646 = vld [vmem:[#allocation9 + $0x820] sm:$0xff]
    %v647 = vld [vmem:[#allocation9 + $0x828] sm:$0xff]
    %v648 = vld [vmem:[#allocation9 + $0x830] sm:$0xff]
    %v649 = vld [vmem:[#allocation9 + $0x838] sm:$0xff]
    %v650 = vld [vmem:[#allocation9 + $0x840] sm:$0xff]
    %v651 = vld [vmem:[#allocation9 + $0x848] sm:$0xff]
    %v652 = vld [vmem:[#allocation9 + $0x850] sm:$0xff]
    %v653 = vld [vmem:[#allocation9 + $0x858] sm:$0xff]
    %v654 = vld [vmem:[#allocation9 + $0x860] sm:$0xff]
    %v655 = vld [vmem:[#allocation9 + $0x868] sm:$0xff]
    %v656 = vld [vmem:[#allocation9 + $0x870] sm:$0xff]
    %v657 = vld [vmem:[#allocation9 + $0x878] sm:$0xff]
    %v658 = vld [vmem:[#allocation9 + $0x880] sm:$0xff]
    %v659 = vld [vmem:[#allocation9 + $0x888] sm:$0xff]
    %v660 = vld [vmem:[#allocation9 + $0x890] sm:$0xff]
    %v661 = vld [vmem:[#allocation9 + $0x898] sm:$0xff]
    %v662 = vld [vmem:[#allocation9 + $0x8a0] sm:$0xff]
    %v663 = vld [vmem:[#allocation9 + $0x8a8] sm:$0xff]
    %v664 = vld [vmem:[#allocation9 + $0x8b0] sm:$0xff]
    %v665 = vld [vmem:[#allocation9 + $0x8b8] sm:$0xff]
    %v666 = vld [vmem:[#allocation9 + $0x8c0] sm:$0xff]
    %v667 = vld [vmem:[#allocation9 + $0x8c8] sm:$0xff]
    %v668 = vld [vmem:[#allocation9 + $0x8d0] sm:$0xff]
    %v669 = vld [vmem:[#allocation9 + $0x8d8] sm:$0xff]
    %v670 = vld [vmem:[#allocation9 + $0x8e0] sm:$0xff]
    %v671 = vld [vmem:[#allocation9 + $0x8e8] sm:$0xff]
    %v672 = vld [vmem:[#allocation9 + $0x8f0] sm:$0xff]
    %v673 = vld [vmem:[#allocation9 + $0x8f8] sm:$0xff]
    %v674 = vld [vmem:[#allocation9 + $0x900] sm:$0xff]
    %v675 = vld [vmem:[#allocation9 + $0x908] sm:$0xff]
    %v676 = vld [vmem:[#allocation9 + $0x910] sm:$0xff]
    %v677 = vld [vmem:[#allocation9 + $0x918] sm:$0xff]
    %v678 = vld [vmem:[#allocation9 + $0x920] sm:$0xff]
    %v679 = vld [vmem:[#allocation9 + $0x928] sm:$0xff]
    %v680 = vld [vmem:[#allocation9 + $0x930] sm:$0xff]
    %v681 = vld [vmem:[#allocation9 + $0x938] sm:$0xff]
    %v682 = vld [vmem:[#allocation9 + $0x940] sm:$0xff]
    %v683 = vld [vmem:[#allocation9 + $0x948] sm:$0xff]
    %v684 = vld [vmem:[#allocation9 + $0x950] sm:$0xff]
    %v685 = vld [vmem:[#allocation9 + $0x958] sm:$0xff]
    %v686 = vld [vmem:[#allocation9 + $0x960] sm:$0xff]
    %v687 = vld [vmem:[#allocation9 + $0x968] sm:$0xff]
    %v688 = vld [vmem:[#allocation9 + $0x970] sm:$0xff]
    %v689 = vld [vmem:[#allocation9 + $0x978] sm:$0xff]
    %v690 = vld [vmem:[#allocation9 + $0x980] sm:$0xff]
    %v691 = vld [vmem:[#allocation9 + $0x988] sm:$0xff]
    %v692 = vld [vmem:[#allocation9 + $0x990] sm:$0xff]
    %v693 = vld [vmem:[#allocation9 + $0x998] sm:$0xff]
    %v694 = vld [vmem:[#allocation9 + $0x9a0] sm:$0xff]
    %v695 = vld [vmem:[#allocation9 + $0x9a8] sm:$0xff]
    %v696 = vld [vmem:[#allocation9 + $0x9b0] sm:$0xff]
    %v697 = vld [vmem:[#allocation9 + $0x9b8] sm:$0xff]
    %v698 = vld [vmem:[#allocation9 + $0x9c0] sm:$0xff]
    %v699 = vld [vmem:[#allocation9 + $0x9c8] sm:$0xff]
    %v700 = vld [vmem:[#allocation9 + $0x9d0] sm:$0xff]
    %v701 = vld [vmem:[#allocation9 + $0x9d8] sm:$0xff]
    %v702 = vld [vmem:[#allocation9 + $0x9e0] sm:$0xff]
    %v703 = vld [vmem:[#allocation9 + $0x9e8] sm:$0xff]
    %v704 = vld [vmem:[#allocation9 + $0x9f0] sm:$0xff]
    %v705 = vld [vmem:[#allocation9 + $0x9f8] sm:$0xff]
    %v706 = vld [vmem:[#allocation9 + $0xa00] sm:$0xff]
    %v707 = vld [vmem:[#allocation9 + $0xa08] sm:$0xff]
    %v708 = vld [vmem:[#allocation9 + $0xa10] sm:$0xff]
    %v709 = vld [vmem:[#allocation9 + $0xa18] sm:$0xff]
    %v710 = vld [vmem:[#allocation9 + $0xa20] sm:$0xff]
    %v711 = vld [vmem:[#allocation9 + $0xa28] sm:$0xff]
    %v712 = vld [vmem:[#allocation9 + $0xa30] sm:$0xff]
    %v713 = vld [vmem:[#allocation9 + $0xa38] sm:$0xff]
    %v714 = vld [vmem:[#allocation9 + $0xa40] sm:$0xff]
    %v715 = vld [vmem:[#allocation9 + $0xa48] sm:$0xff]
    %v716 = vld [vmem:[#allocation9 + $0xa50] sm:$0xff]
    %v717 = vld [vmem:[#allocation9 + $0xa58] sm:$0xff]
    %v718 = vld [vmem:[#allocation9 + $0xa60] sm:$0xff]
    %v719 = vld [vmem:[#allocation9 + $0xa68] sm:$0xff]
    %v720 = vld [vmem:[#allocation9 + $0xa70] sm:$0xff]
    %v721 = vld [vmem:[#allocation9 + $0xa78] sm:$0xff]
    %v722 = vld [vmem:[#allocation9 + $0xa80] sm:$0xff]
    %v723 = vld [vmem:[#allocation9 + $0xa88] sm:$0xff]
    %v724 = vld [vmem:[#allocation9 + $0xa90] sm:$0xff]
    %v725 = vld [vmem:[#allocation9 + $0xa98] sm:$0xff]
    %v726 = vld [vmem:[#allocation9 + $0xaa0] sm:$0xff]
    %v727 = vld [vmem:[#allocation9 + $0xaa8] sm:$0xff]
    %v728 = vld [vmem:[#allocation9 + $0xab0] sm:$0xff]
    %v729 = vld [vmem:[#allocation9 + $0xab8] sm:$0xff]
    %v730 = vld [vmem:[#allocation9 + $0xac0] sm:$0xff]
    %v731 = vld [vmem:[#allocation9 + $0xac8] sm:$0xff]
    %v732 = vld [vmem:[#allocation9 + $0xad0] sm:$0xff]
    %v733 = vld [vmem:[#allocation9 + $0xad8] sm:$0xff]
    %v734 = vld [vmem:[#allocation9 + $0xae0] sm:$0xff]
    %v735 = vld [vmem:[#allocation9 + $0xae8] sm:$0xff]
    %v736 = vld [vmem:[#allocation9 + $0xaf0] sm:$0xff]
    %v737 = vld [vmem:[#allocation9 + $0xaf8] sm:$0xff]
    %v738 = vld [vmem:[#allocation9 + $0xb00] sm:$0xff]
    %v739 = vld [vmem:[#allocation9 + $0xb08] sm:$0xff]
    %v740 = vld [vmem:[#allocation9 + $0xb10] sm:$0xff]
    %v741 = vld [vmem:[#allocation9 + $0xb18] sm:$0xff]
    %v742 = vld [vmem:[#allocation9 + $0xb20] sm:$0xff]
    %v743 = vld [vmem:[#allocation9 + $0xb28] sm:$0xff]
    %v744 = vld [vmem:[#allocation9 + $0xb30] sm:$0xff]
    %v745 = vld [vmem:[#allocation9 + $0xb38] sm:$0xff]
    %v746 = vld [vmem:[#allocation9 + $0xb40] sm:$0xff]
    %v747 = vld [vmem:[#allocation9 + $0xb48] sm:$0xff]
    %v748 = vld [vmem:[#allocation9 + $0xb50] sm:$0xff]
    %v749 = vld [vmem:[#allocation9 + $0xb58] sm:$0xff]
    %v750 = vld [vmem:[#allocation9 + $0xb60] sm:$0xff]
    %v751 = vld [vmem:[#allocation9 + $0xb68] sm:$0xff]
    %v752 = vld [vmem:[#allocation9 + $0xb70] sm:$0xff]
    %v753 = vld [vmem:[#allocation9 + $0xb78] sm:$0xff]
    %v754 = vld [vmem:[#allocation9 + $0xb80] sm:$0xff]
    %v755 = vld [vmem:[#allocation9 + $0xb88] sm:$0xff]
    %v756 = vld [vmem:[#allocation9 + $0xb90] sm:$0xff]
    %v757 = vld [vmem:[#allocation9 + $0xb98] sm:$0xff]
    %v758 = vld [vmem:[#allocation9 + $0xba0] sm:$0xff]
    %v759 = vld [vmem:[#allocation9 + $0xba8] sm:$0xff]
    %v760 = vld [vmem:[#allocation9 + $0xbb0] sm:$0xff]
    %v761 = vld [vmem:[#allocation9 + $0xbb8] sm:$0xff]
    %v762 = vld [vmem:[#allocation9 + $0xbc0] sm:$0xff]
    %v763 = vld [vmem:[#allocation9 + $0xbc8] sm:$0xff]
    %v764 = vld [vmem:[#allocation9 + $0xbd0] sm:$0xff]
    %v765 = vld [vmem:[#allocation9 + $0xbd8] sm:$0xff]
    %v766 = vld [vmem:[#allocation9 + $0xbe0] sm:$0xff]
    %v767 = vld [vmem:[#allocation9 + $0xbe8] sm:$0xff]
    %v768 = vld [vmem:[#allocation9 + $0xbf0] sm:$0xff]
    %v769 = vld [vmem:[#allocation9 + $0xbf8] sm:$0xff]
    %v770 = vld [vmem:[#allocation9 + $0xc00] sm:$0xff]
    %v771 = vld [vmem:[#allocation9 + $0xc08] sm:$0xff]
    %v772 = vld [vmem:[#allocation9 + $0xc10] sm:$0xff]
    %v773 = vld [vmem:[#allocation9 + $0xc18] sm:$0xff]
    %v774 = vld [vmem:[#allocation9 + $0xc20] sm:$0xff]
    %v775 = vld [vmem:[#allocation9 + $0xc28] sm:$0xff]
    %v776 = vld [vmem:[#allocation9 + $0xc30] sm:$0xff]
    %v777 = vld [vmem:[#allocation9 + $0xc38] sm:$0xff]
    %v778 = vld [vmem:[#allocation9 + $0xc40] sm:$0xff]
    %v779 = vld [vmem:[#allocation9 + $0xc48] sm:$0xff]
    %v780 = vld [vmem:[#allocation9 + $0xc50] sm:$0xff]
    %v781 = vld [vmem:[#allocation9 + $0xc58] sm:$0xff]
    %v782 = vld [vmem:[#allocation9 + $0xc60] sm:$0xff]
    %v783 = vld [vmem:[#allocation9 + $0xc68] sm:$0xff]
    %v784 = vld [vmem:[#allocation9 + $0xc70] sm:$0xff]
    %v785 = vld [vmem:[#allocation9 + $0xc78] sm:$0xff]
    %v786 = vld [vmem:[#allocation9 + $0xc80] sm:$0xff]
    %v787 = vld [vmem:[#allocation9 + $0xc88] sm:$0xff]
    %v788 = vld [vmem:[#allocation9 + $0xc90] sm:$0xff]
    %v789 = vld [vmem:[#allocation9 + $0xc98] sm:$0xff]
    %v790 = vld [vmem:[#allocation9 + $0xca0] sm:$0xff]
    %v791 = vld [vmem:[#allocation9 + $0xca8] sm:$0xff]
    %v792 = vld [vmem:[#allocation9 + $0xcb0] sm:$0xff]
    %v793 = vld [vmem:[#allocation9 + $0xcb8] sm:$0xff]
    %v794 = vld [vmem:[#allocation9 + $0xcc0] sm:$0xff]
    %v795 = vld [vmem:[#allocation9 + $0xcc8] sm:$0xff]
    %v796 = vld [vmem:[#allocation9 + $0xcd0] sm:$0xff]
    %v797 = vld [vmem:[#allocation9 + $0xcd8] sm:$0xff]
    %v798 = vld [vmem:[#allocation9 + $0xce0] sm:$0xff]
    %v799 = vld [vmem:[#allocation9 + $0xce8] sm:$0xff]
    %v800 = vld [vmem:[#allocation9 + $0xcf0] sm:$0xff]
    %v801 = vld [vmem:[#allocation9 + $0xcf8] sm:$0xff]
    %v802 = vld [vmem:[#allocation9 + $0xd00] sm:$0xff]
    %v803 = vld [vmem:[#allocation9 + $0xd08] sm:$0xff]
    %v804 = vld [vmem:[#allocation9 + $0xd10] sm:$0xff]
    %v805 = vld [vmem:[#allocation9 + $0xd18] sm:$0xff]
    %v806 = vld [vmem:[#allocation9 + $0xd20] sm:$0xff]
    %v807 = vld [vmem:[#allocation9 + $0xd28] sm:$0xff]
    %v808 = vld [vmem:[#allocation9 + $0xd30] sm:$0xff]
    %v809 = vld [vmem:[#allocation9 + $0xd38] sm:$0xff]
    %v810 = vld [vmem:[#allocation9 + $0xd40] sm:$0xff]
    %v811 = vld [vmem:[#allocation9 + $0xd48] sm:$0xff]
    %v812 = vld [vmem:[#allocation9 + $0xd50] sm:$0xff]
    %v813 = vld [vmem:[#allocation9 + $0xd58] sm:$0xff]
    %v814 = vld [vmem:[#allocation9 + $0xd60] sm:$0xff]
    %v815 = vld [vmem:[#allocation9 + $0xd68] sm:$0xff]
    %v816 = vld [vmem:[#allocation9 + $0xd70] sm:$0xff]
    %v817 = vld [vmem:[#allocation9 + $0xd78] sm:$0xff]
    %v818 = vld [vmem:[#allocation9 + $0xd80] sm:$0xff]
    %v819 = vld [vmem:[#allocation9 + $0xd88] sm:$0xff]
    %v820 = vld [vmem:[#allocation9 + $0xd90] sm:$0xff]
    %v821 = vld [vmem:[#allocation9 + $0xd98] sm:$0xff]
    %v822 = vld [vmem:[#allocation9 + $0xda0] sm:$0xff]
    %v823 = vld [vmem:[#allocation9 + $0xda8] sm:$0xff]
    %v824 = vld [vmem:[#allocation9 + $0xdb0] sm:$0xff]
    %v825 = vld [vmem:[#allocation9 + $0xdb8] sm:$0xff]
    %v826 = vld [vmem:[#allocation9 + $0xdc0] sm:$0xff]
    %v827 = vld [vmem:[#allocation9 + $0xdc8] sm:$0xff]
    %v828 = vld [vmem:[#allocation9 + $0xdd0] sm:$0xff]
    %v829 = vld [vmem:[#allocation9 + $0xdd8] sm:$0xff]
    %v830 = vld [vmem:[#allocation9 + $0xde0] sm:$0xff]
    %v831 = vld [vmem:[#allocation9 + $0xde8] sm:$0xff]
    %v832 = vld [vmem:[#allocation9 + $0xdf0] sm:$0xff]
    %v833 = vld [vmem:[#allocation9 + $0xdf8] sm:$0xff]
    %v834 = vld [vmem:[#allocation9 + $0xe00] sm:$0xff]
    %v835 = vld [vmem:[#allocation9 + $0xe08] sm:$0xff]
    %v836 = vld [vmem:[#allocation9 + $0xe10] sm:$0xff]
    %v837 = vld [vmem:[#allocation9 + $0xe18] sm:$0xff]
    %v838 = vld [vmem:[#allocation9 + $0xe20] sm:$0xff]
    %v839 = vld [vmem:[#allocation9 + $0xe28] sm:$0xff]
    %v840 = vld [vmem:[#allocation9 + $0xe30] sm:$0xff]
    %v841 = vld [vmem:[#allocation9 + $0xe38] sm:$0xff]
    %v842 = vld [vmem:[#allocation9 + $0xe40] sm:$0xff]
    %v843 = vld [vmem:[#allocation9 + $0xe48] sm:$0xff]
    %v844 = vld [vmem:[#allocation9 + $0xe50] sm:$0xff]
    %v845 = vld [vmem:[#allocation9 + $0xe58] sm:$0xff]
    %v846 = vld [vmem:[#allocation9 + $0xe60] sm:$0xff]
    %v847 = vld [vmem:[#allocation9 + $0xe68] sm:$0xff]
    %v848 = vld [vmem:[#allocation9 + $0xe70] sm:$0xff]
    %v849 = vld [vmem:[#allocation9 + $0xe78] sm:$0xff]
    %v850 = vld [vmem:[#allocation9 + $0xe80] sm:$0xff]
    %v851 = vld [vmem:[#allocation9 + $0xe88] sm:$0xff]
    %v852 = vld [vmem:[#allocation9 + $0xe90] sm:$0xff]
    %v853 = vld [vmem:[#allocation9 + $0xe98] sm:$0xff]
    %v854 = vld [vmem:[#allocation9 + $0xea0] sm:$0xff]
    %v855 = vld [vmem:[#allocation9 + $0xea8] sm:$0xff]
    %v856 = vld [vmem:[#allocation9 + $0xeb0] sm:$0xff]
    %v857 = vld [vmem:[#allocation9 + $0xeb8] sm:$0xff]
    %v858 = vld [vmem:[#allocation9 + $0xec0] sm:$0xff]
    %v859 = vld [vmem:[#allocation9 + $0xec8] sm:$0xff]
    %v860 = vld [vmem:[#allocation9 + $0xed0] sm:$0xff]
    %v861 = vld [vmem:[#allocation9 + $0xed8] sm:$0xff]
    %v862 = vld [vmem:[#allocation9 + $0xee0] sm:$0xff]
    %v863 = vld [vmem:[#allocation9 + $0xee8] sm:$0xff]
    %v864 = vld [vmem:[#allocation9 + $0xef0] sm:$0xff]
    %v865 = vld [vmem:[#allocation9 + $0xef8] sm:$0xff]
    %v866 = vld [vmem:[#allocation9 + $0xf00] sm:$0xff]
    %v867 = vld [vmem:[#allocation9 + $0xf08] sm:$0xff]
    %v868 = vld [vmem:[#allocation9 + $0xf10] sm:$0xff]
    %v869 = vld [vmem:[#allocation9 + $0xf18] sm:$0xff]
    %v870 = vld [vmem:[#allocation9 + $0xf20] sm:$0xff]
    %v871 = vld [vmem:[#allocation9 + $0xf28] sm:$0xff]
    %v872 = vld [vmem:[#allocation9 + $0xf30] sm:$0xff]
    %v873 = vld [vmem:[#allocation9 + $0xf38] sm:$0xff]
    %v874 = vld [vmem:[#allocation9 + $0xf40] sm:$0xff]
    %v875 = vld [vmem:[#allocation9 + $0xf48] sm:$0xff]
    %v876 = vld [vmem:[#allocation9 + $0xf50] sm:$0xff]
    %v877 = vld [vmem:[#allocation9 + $0xf58] sm:$0xff]
    %v878 = vld [vmem:[#allocation9 + $0xf60] sm:$0xff]
    %v879 = vld [vmem:[#allocation9 + $0xf68] sm:$0xff]
    %v880 = vld [vmem:[#allocation9 + $0xf70] sm:$0xff]
    %v881 = vld [vmem:[#allocation9 + $0xf78] sm:$0xff]
    %v882 = vld [vmem:[#allocation9 + $0xf80] sm:$0xff]
    %v883 = vld [vmem:[#allocation9 + $0xf88] sm:$0xff]
    %v884 = vld [vmem:[#allocation9 + $0xf90] sm:$0xff]
    %v885 = vld [vmem:[#allocation9 + $0xf98] sm:$0xff]
    %v886 = vld [vmem:[#allocation9 + $0xfa0] sm:$0xff]
    %v887 = vld [vmem:[#allocation9 + $0xfa8] sm:$0xff]
    %v888 = vld [vmem:[#allocation9 + $0xfb0] sm:$0xff]
    %v889 = vld [vmem:[#allocation9 + $0xfb8] sm:$0xff]
    %v890 = vld [vmem:[#allocation9 + $0xfc0] sm:$0xff]
    %v891 = vld [vmem:[#allocation9 + $0xfc8] sm:$0xff]
    %v892 = vld [vmem:[#allocation9 + $0xfd0] sm:$0xff]
    %v893 = vld [vmem:[#allocation9 + $0xfd8] sm:$0xff]
    %v894 = vld [vmem:[#allocation9 + $0xfe0] sm:$0xff]
    %v895 = vld [vmem:[#allocation9 + $0xfe8] sm:$0xff]
    %v896 = vld [vmem:[#allocation9 + $0xff0] sm:$0xff]
    %v897 = vld [vmem:[#allocation9 + $0xff8] sm:$0xff]
    %v898 = vld [vmem:[#allocation11] sm:$0xf]
    %v900 = vperm.slane %v898, 0
    %v901 = vperm.slane %v898, 1
    %v902 = vperm.slane %v898, 2
    %v903 = vperm.slane %v898, 3
    %908 = vmatpush.msra.mxu0 %v446
    %909 = vmatpush.msra.mxu0 %v442
    %910 = vmatpush.msra.mxu0 %v438
    %911 = vmatpush.msra.mxu0 %v434
    %912 = vmatpush.msra.mxu0 %v430
    %913 = vmatpush.msra.mxu0 %v426
    %914 = vmatpush.msra.mxu0 %v422
    %915 = vmatpush.msra.mxu0 %v418
    %916 = vmatpush.msra.mxu0 %v414
    %917 = vmatpush.msra.mxu0 %v410
    %918 = vmatpush.msra.mxu0 %v406
    %919 = vmatpush.msra.mxu0 %v402
    %920 = vmatpush.msra.mxu0 %v398
    %921 = vmatpush.msra.mxu0 %v394
    %922 = vmatpush.msra.mxu0 %v390
    %923 = vmatpush.msra.mxu0 %v386
    %924 = vmatmul.f32.gmra.mxu0 %v378
    %v925 = vpop.f32.mrf.mxu0
    %v926 = vadd.f32 %v900, %v925
    %927 = vdwg.mxu0
    %928 = vmatpush.msra.mxu0 %v510
    %929 = vmatpush.msra.mxu0 %v506
    %930 = vmatpush.msra.mxu0 %v502
    %931 = vmatpush.msra.mxu0 %v498
    %932 = vmatpush.msra.mxu0 %v494
    %933 = vmatpush.msra.mxu0 %v490
    %934 = vmatpush.msra.mxu0 %v486
    %935 = vmatpush.msra.mxu0 %v482
    %936 = vmatpush.msra.mxu0 %v478
    %937 = vmatpush.msra.mxu0 %v474
    %938 = vmatpush.msra.mxu0 %v470
    %939 = vmatpush.msra.mxu0 %v466
    %940 = vmatpush.msra.mxu0 %v462
    %941 = vmatpush.msra.mxu0 %v458
    %942 = vmatpush.msra.mxu0 %v454
    %943 = vmatpush.msra.mxu0 %v450
    %944 = vmatmul.f32.gmra.mxu0 %v379
    %v945 = vpop.f32.mrf.mxu0
    %v946 = vadd.f32 %v926, %v945
    %947 = vdwg.mxu0
    %948 = vmatpush.msra.mxu0 %v574
    %949 = vmatpush.msra.mxu0 %v570
    %950 = vmatpush.msra.mxu0 %v566
    %951 = vmatpush.msra.mxu0 %v562
    %952 = vmatpush.msra.mxu0 %v558
    %953 = vmatpush.msra.mxu0 %v554
    %954 = vmatpush.msra.mxu0 %v550
    %955 = vmatpush.msra.mxu0 %v546
    %956 = vmatpush.msra.mxu0 %v542
    %957 = vmatpush.msra.mxu0 %v538
    %958 = vmatpush.msra.mxu0 %v534
    %959 = vmatpush.msra.mxu0 %v530
    %960 = vmatpush.msra.mxu0 %v526
    %961 = vmatpush.msra.mxu0 %v522
    %962 = vmatpush.msra.mxu0 %v518
    %963 = vmatpush.msra.mxu0 %v514
    %964 = vmatmul.f32.gmra.mxu0 %v380
    %v965 = vpop.f32.mrf.mxu0
    %v966 = vadd.f32 %v946, %v965
    %967 = vdwg.mxu0
    %968 = vmatpush.msra.mxu0 %v638
    %969 = vmatpush.msra.mxu0 %v634
    %970 = vmatpush.msra.mxu0 %v630
    %971 = vmatpush.msra.mxu0 %v626
    %972 = vmatpush.msra.mxu0 %v622
    %973 = vmatpush.msra.mxu0 %v618
    %974 = vmatpush.msra.mxu0 %v614
    %975 = vmatpush.msra.mxu0 %v610
    %976 = vmatpush.msra.mxu0 %v606
    %977 = vmatpush.msra.mxu0 %v602
    %978 = vmatpush.msra.mxu0 %v598
    %979 = vmatpush.msra.mxu0 %v594
    %980 = vmatpush.msra.mxu0 %v590
    %981 = vmatpush.msra.mxu0 %v586
    %982 = vmatpush.msra.mxu0 %v582
    %983 = vmatpush.msra.mxu0 %v578
    %984 = vmatmul.f32.gmra.mxu0 %v381
    %v985 = vpop.f32.mrf.mxu0
    %v986 = vadd.f32 %v966, %v985
    %987 = vdwg.mxu0
    %988 = vmatpush.msra.mxu0 %v702
    %989 = vmatpush.msra.mxu0 %v698
    %990 = vmatpush.msra.mxu0 %v694
    %991 = vmatpush.msra.mxu0 %v690
    %992 = vmatpush.msra.mxu0 %v686
    %993 = vmatpush.msra.mxu0 %v682
    %994 = vmatpush.msra.mxu0 %v678
    %995 = vmatpush.msra.mxu0 %v674
    %996 = vmatpush.msra.mxu0 %v670
    %997 = vmatpush.msra.mxu0 %v666
    %998 = vmatpush.msra.mxu0 %v662
    %999 = vmatpush.msra.mxu0 %v658
    %1000 = vmatpush.msra.mxu0 %v654
    %1001 = vmatpush.msra.mxu0 %v650
    %1002 = vmatpush.msra.mxu0 %v646
    %1003 = vmatpush.msra.mxu0 %v642
    %1004 = vmatmul.f32.gmra.mxu0 %v382
    %v1005 = vpop.f32.mrf.mxu0
    %v1006 = vadd.f32 %v986, %v1005
    %1007 = vdwg.mxu0
    %1008 = vmatpush.msra.mxu0 %v766
    %1009 = vmatpush.msra.mxu0 %v762
    %1010 = vmatpush.msra.mxu0 %v758
    %1011 = vmatpush.msra.mxu0 %v754
    %1012 = vmatpush.msra.mxu0 %v750
    %1013 = vmatpush.msra.mxu0 %v746
    %1014 = vmatpush.msra.mxu0 %v742
    %1015 = vmatpush.msra.mxu0 %v738
    %1016 = vmatpush.msra.mxu0 %v734
    %1017 = vmatpush.msra.mxu0 %v730
    %1018 = vmatpush.msra.mxu0 %v726
    %1019 = vmatpush.msra.mxu0 %v722
    %1020 = vmatpush.msra.mxu0 %v718
    %1021 = vmatpush.msra.mxu0 %v714
    %1022 = vmatpush.msra.mxu0 %v710
    %1023 = vmatpush.msra.mxu0 %v706
    %1024 = vmatmul.f32.gmra.mxu0 %v383
    %v1025 = vpop.f32.mrf.mxu0
    %v1026 = vadd.f32 %v1006, %v1025
    %1027 = vdwg.mxu0
    %1028 = vmatpush.msra.mxu0 %v830
    %1029 = vmatpush.msra.mxu0 %v826
    %1030 = vmatpush.msra.mxu0 %v822
    %1031 = vmatpush.msra.mxu0 %v818
    %1032 = vmatpush.msra.mxu0 %v814
    %1033 = vmatpush.msra.mxu0 %v810
    %1034 = vmatpush.msra.mxu0 %v806
    %1035 = vmatpush.msra.mxu0 %v802
    %1036 = vmatpush.msra.mxu0 %v798
    %1037 = vmatpush.msra.mxu0 %v794
    %1038 = vmatpush.msra.mxu0 %v790
    %1039 = vmatpush.msra.mxu0 %v786
    %1040 = vmatpush.msra.mxu0 %v782
    %1041 = vmatpush.msra.mxu0 %v778
    %1042 = vmatpush.msra.mxu0 %v774
    %1043 = vmatpush.msra.mxu0 %v770
    %1044 = vmatmul.f32.gmra.mxu0 %v384
    %v1045 = vpop.f32.mrf.mxu0
    %v1046 = vadd.f32 %v1026, %v1045
    %1047 = vdwg.mxu0
    %1048 = vmatpush.msra.mxu0 %v894
    %1049 = vmatpush.msra.mxu0 %v890
    %1050 = vmatpush.msra.mxu0 %v886
    %1051 = vmatpush.msra.mxu0 %v882
    %1052 = vmatpush.msra.mxu0 %v878
    %1053 = vmatpush.msra.mxu0 %v874
    %1054 = vmatpush.msra.mxu0 %v870
    %1055 = vmatpush.msra.mxu0 %v866
    %1056 = vmatpush.msra.mxu0 %v862
    %1057 = vmatpush.msra.mxu0 %v858
    %1058 = vmatpush.msra.mxu0 %v854
    %1059 = vmatpush.msra.mxu0 %v850
    %1060 = vmatpush.msra.mxu0 %v846
    %1061 = vmatpush.msra.mxu0 %v842
    %1062 = vmatpush.msra.mxu0 %v838
    %1063 = vmatpush.msra.mxu0 %v834
    %1064 = vmatmul.f32.gmra.mxu0 %v385
    %v1065 = vpop.f32.mrf.mxu0
    %v1066 = vadd.f32 %v1046, %v1065
    %1067 = vdwg.mxu0
    %1068 = vmatpush.msra.mxu0 %v447
    %1069 = vmatpush.msra.mxu0 %v443
    %1070 = vmatpush.msra.mxu0 %v439
    %1071 = vmatpush.msra.mxu0 %v435
    %1072 = vmatpush.msra.mxu0 %v431
    %1073 = vmatpush.msra.mxu0 %v427
    %1074 = vmatpush.msra.mxu0 %v423
    %1075 = vmatpush.msra.mxu0 %v419
    %1076 = vmatpush.msra.mxu0 %v415
    %1077 = vmatpush.msra.mxu0 %v411
    %1078 = vmatpush.msra.mxu0 %v407
    %1079 = vmatpush.msra.mxu0 %v403
    %1080 = vmatpush.msra.mxu0 %v399
    %1081 = vmatpush.msra.mxu0 %v395
    %1082 = vmatpush.msra.mxu0 %v391
    %1083 = vmatpush.msra.mxu0 %v387
    %1084 = vmatmul.f32.gmra.mxu0 %v378
    %v1085 = vpop.f32.mrf.mxu0
    %v1086 = vadd.f32 %v901, %v1085
    %1087 = vdwg.mxu0
    %1088 = vmatpush.msra.mxu0 %v511
    %1089 = vmatpush.msra.mxu0 %v507
    %1090 = vmatpush.msra.mxu0 %v503
    %1091 = vmatpush.msra.mxu0 %v499
    %1092 = vmatpush.msra.mxu0 %v495
    %1093 = vmatpush.msra.mxu0 %v491
    %1094 = vmatpush.msra.mxu0 %v487
    %1095 = vmatpush.msra.mxu0 %v483
    %1096 = vmatpush.msra.mxu0 %v479
    %1097 = vmatpush.msra.mxu0 %v475
    %1098 = vmatpush.msra.mxu0 %v471
    %1099 = vmatpush.msra.mxu0 %v467
    %1100 = vmatpush.msra.mxu0 %v463
    %1101 = vmatpush.msra.mxu0 %v459
    %1102 = vmatpush.msra.mxu0 %v455
    %1103 = vmatpush.msra.mxu0 %v451
    %1104 = vmatmul.f32.gmra.mxu0 %v379
    %v1105 = vpop.f32.mrf.mxu0
    %v1106 = vadd.f32 %v1086, %v1105
    %1107 = vdwg.mxu0
    %1108 = vmatpush.msra.mxu0 %v575
    %1109 = vmatpush.msra.mxu0 %v571
    %1110 = vmatpush.msra.mxu0 %v567
    %1111 = vmatpush.msra.mxu0 %v563
    %1112 = vmatpush.msra.mxu0 %v559
    %1113 = vmatpush.msra.mxu0 %v555
    %1114 = vmatpush.msra.mxu0 %v551
    %1115 = vmatpush.msra.mxu0 %v547
    %1116 = vmatpush.msra.mxu0 %v543
    %1117 = vmatpush.msra.mxu0 %v539
    %1118 = vmatpush.msra.mxu0 %v535
    %1119 = vmatpush.msra.mxu0 %v531
    %1120 = vmatpush.msra.mxu0 %v527
    %1121 = vmatpush.msra.mxu0 %v523
    %1122 = vmatpush.msra.mxu0 %v519
    %1123 = vmatpush.msra.mxu0 %v515
    %1124 = vmatmul.f32.gmra.mxu0 %v380
    %v1125 = vpop.f32.mrf.mxu0
    %v1126 = vadd.f32 %v1106, %v1125
    %1127 = vdwg.mxu0
    %1128 = vmatpush.msra.mxu0 %v639
    %1129 = vmatpush.msra.mxu0 %v635
    %1130 = vmatpush.msra.mxu0 %v631
    %1131 = vmatpush.msra.mxu0 %v627
    %1132 = vmatpush.msra.mxu0 %v623
    %1133 = vmatpush.msra.mxu0 %v619
    %1134 = vmatpush.msra.mxu0 %v615
    %1135 = vmatpush.msra.mxu0 %v611
    %1136 = vmatpush.msra.mxu0 %v607
    %1137 = vmatpush.msra.mxu0 %v603
    %1138 = vmatpush.msra.mxu0 %v599
    %1139 = vmatpush.msra.mxu0 %v595
    %1140 = vmatpush.msra.mxu0 %v591
    %1141 = vmatpush.msra.mxu0 %v587
    %1142 = vmatpush.msra.mxu0 %v583
    %1143 = vmatpush.msra.mxu0 %v579
    %1144 = vmatmul.f32.gmra.mxu0 %v381
    %v1145 = vpop.f32.mrf.mxu0
    %v1146 = vadd.f32 %v1126, %v1145
    %1147 = vdwg.mxu0
    %1148 = vmatpush.msra.mxu0 %v703
    %1149 = vmatpush.msra.mxu0 %v699
    %1150 = vmatpush.msra.mxu0 %v695
    %1151 = vmatpush.msra.mxu0 %v691
    %1152 = vmatpush.msra.mxu0 %v687
    %1153 = vmatpush.msra.mxu0 %v683
    %1154 = vmatpush.msra.mxu0 %v679
    %1155 = vmatpush.msra.mxu0 %v675
    %1156 = vmatpush.msra.mxu0 %v671
    %1157 = vmatpush.msra.mxu0 %v667
    %1158 = vmatpush.msra.mxu0 %v663
    %1159 = vmatpush.msra.mxu0 %v659
    %1160 = vmatpush.msra.mxu0 %v655
    %1161 = vmatpush.msra.mxu0 %v651
    %1162 = vmatpush.msra.mxu0 %v647
    %1163 = vmatpush.msra.mxu0 %v643
    %1164 = vmatmul.f32.gmra.mxu0 %v382
    %v1165 = vpop.f32.mrf.mxu0
    %v1166 = vadd.f32 %v1146, %v1165
    %1167 = vdwg.mxu0
    %1168 = vmatpush.msra.mxu0 %v767
    %1169 = vmatpush.msra.mxu0 %v763
    %1170 = vmatpush.msra.mxu0 %v759
    %1171 = vmatpush.msra.mxu0 %v755
    %1172 = vmatpush.msra.mxu0 %v751
    %1173 = vmatpush.msra.mxu0 %v747
    %1174 = vmatpush.msra.mxu0 %v743
    %1175 = vmatpush.msra.mxu0 %v739
    %1176 = vmatpush.msra.mxu0 %v735
    %1177 = vmatpush.msra.mxu0 %v731
    %1178 = vmatpush.msra.mxu0 %v727
    %1179 = vmatpush.msra.mxu0 %v723
    %1180 = vmatpush.msra.mxu0 %v719
    %1181 = vmatpush.msra.mxu0 %v715
    %1182 = vmatpush.msra.mxu0 %v711
    %1183 = vmatpush.msra.mxu0 %v707
    %1184 = vmatmul.f32.gmra.mxu0 %v383
    %v1185 = vpop.f32.mrf.mxu0
    %v1186 = vadd.f32 %v1166, %v1185
    %1187 = vdwg.mxu0
    %1188 = vmatpush.msra.mxu0 %v831
    %1189 = vmatpush.msra.mxu0 %v827
    %1190 = vmatpush.msra.mxu0 %v823
    %1191 = vmatpush.msra.mxu0 %v819
    %1192 = vmatpush.msra.mxu0 %v815
    %1193 = vmatpush.msra.mxu0 %v811
    %1194 = vmatpush.msra.mxu0 %v807
    %1195 = vmatpush.msra.mxu0 %v803
    %1196 = vmatpush.msra.mxu0 %v799
    %1197 = vmatpush.msra.mxu0 %v795
    %1198 = vmatpush.msra.mxu0 %v791
    %1199 = vmatpush.msra.mxu0 %v787
    %1200 = vmatpush.msra.mxu0 %v783
    %1201 = vmatpush.msra.mxu0 %v779
    %1202 = vmatpush.msra.mxu0 %v775
    %1203 = vmatpush.msra.mxu0 %v771
    %1204 = vmatmul.f32.gmra.mxu0 %v384
    %v1205 = vpop.f32.mrf.mxu0
    %v1206 = vadd.f32 %v1186, %v1205
    %1207 = vdwg.mxu0
    %1208 = vmatpush.msra.mxu0 %v895
    %1209 = vmatpush.msra.mxu0 %v891
    %1210 = vmatpush.msra.mxu0 %v887
    %1211 = vmatpush.msra.mxu0 %v883
    %1212 = vmatpush.msra.mxu0 %v879
    %1213 = vmatpush.msra.mxu0 %v875
    %1214 = vmatpush.msra.mxu0 %v871
    %1215 = vmatpush.msra.mxu0 %v867
    %1216 = vmatpush.msra.mxu0 %v863
    %1217 = vmatpush.msra.mxu0 %v859
    %1218 = vmatpush.msra.mxu0 %v855
    %1219 = vmatpush.msra.mxu0 %v851
    %1220 = vmatpush.msra.mxu0 %v847
    %1221 = vmatpush.msra.mxu0 %v843
    %1222 = vmatpush.msra.mxu0 %v839
    %1223 = vmatpush.msra.mxu0 %v835
    %1224 = vmatmul.f32.gmra.mxu0 %v385
    %v1225 = vpop.f32.mrf.mxu0
    %v1226 = vadd.f32 %v1206, %v1225
    %1227 = vdwg.mxu0
    %1228 = vmatpush.msra.mxu0 %v448
    %1229 = vmatpush.msra.mxu0 %v444
    %1230 = vmatpush.msra.mxu0 %v440
    %1231 = vmatpush.msra.mxu0 %v436
    %1232 = vmatpush.msra.mxu0 %v432
    %1233 = vmatpush.msra.mxu0 %v428
    %1234 = vmatpush.msra.mxu0 %v424
    %1235 = vmatpush.msra.mxu0 %v420
    %1236 = vmatpush.msra.mxu0 %v416
    %1237 = vmatpush.msra.mxu0 %v412
    %1238 = vmatpush.msra.mxu0 %v408
    %1239 = vmatpush.msra.mxu0 %v404
    %1240 = vmatpush.msra.mxu0 %v400
    %1241 = vmatpush.msra.mxu0 %v396
    %1242 = vmatpush.msra.mxu0 %v392
    %1243 = vmatpush.msra.mxu0 %v388
    %1244 = vmatmul.f32.gmra.mxu0 %v378
    %v1245 = vpop.f32.mrf.mxu0
    %v1246 = vadd.f32 %v902, %v1245
    %1247 = vdwg.mxu0
    %1248 = vmatpush.msra.mxu0 %v512
    %1249 = vmatpush.msra.mxu0 %v508
    %1250 = vmatpush.msra.mxu0 %v504
    %1251 = vmatpush.msra.mxu0 %v500
    %1252 = vmatpush.msra.mxu0 %v496
    %1253 = vmatpush.msra.mxu0 %v492
    %1254 = vmatpush.msra.mxu0 %v488
    %1255 = vmatpush.msra.mxu0 %v484
    %1256 = vmatpush.msra.mxu0 %v480
    %1257 = vmatpush.msra.mxu0 %v476
    %1258 = vmatpush.msra.mxu0 %v472
    %1259 = vmatpush.msra.mxu0 %v468
    %1260 = vmatpush.msra.mxu0 %v464
    %1261 = vmatpush.msra.mxu0 %v460
    %1262 = vmatpush.msra.mxu0 %v456
    %1263 = vmatpush.msra.mxu0 %v452
    %1264 = vmatmul.f32.gmra.mxu0 %v379
    %v1265 = vpop.f32.mrf.mxu0
    %v1266 = vadd.f32 %v1246, %v1265
    %1267 = vdwg.mxu0
    %1268 = vmatpush.msra.mxu0 %v576
    %1269 = vmatpush.msra.mxu0 %v572
    %1270 = vmatpush.msra.mxu0 %v568
    %1271 = vmatpush.msra.mxu0 %v564
    %1272 = vmatpush.msra.mxu0 %v560
    %1273 = vmatpush.msra.mxu0 %v556
    %1274 = vmatpush.msra.mxu0 %v552
    %1275 = vmatpush.msra.mxu0 %v548
    %1276 = vmatpush.msra.mxu0 %v544
    %1277 = vmatpush.msra.mxu0 %v540
    %1278 = vmatpush.msra.mxu0 %v536
    %1279 = vmatpush.msra.mxu0 %v532
    %1280 = vmatpush.msra.mxu0 %v528
    %1281 = vmatpush.msra.mxu0 %v524
    %1282 = vmatpush.msra.mxu0 %v520
    %1283 = vmatpush.msra.mxu0 %v516
    %1284 = vmatmul.f32.gmra.mxu0 %v380
    %v1285 = vpop.f32.mrf.mxu0
    %v1286 = vadd.f32 %v1266, %v1285
    %1287 = vdwg.mxu0
    %1288 = vmatpush.msra.mxu0 %v640
    %1289 = vmatpush.msra.mxu0 %v636
    %1290 = vmatpush.msra.mxu0 %v632
    %1291 = vmatpush.msra.mxu0 %v628
    %1292 = vmatpush.msra.mxu0 %v624
    %1293 = vmatpush.msra.mxu0 %v620
    %1294 = vmatpush.msra.mxu0 %v616
    %1295 = vmatpush.msra.mxu0 %v612
    %1296 = vmatpush.msra.mxu0 %v608
    %1297 = vmatpush.msra.mxu0 %v604
    %1298 = vmatpush.msra.mxu0 %v600
    %1299 = vmatpush.msra.mxu0 %v596
    %1300 = vmatpush.msra.mxu0 %v592
    %1301 = vmatpush.msra.mxu0 %v588
    %1302 = vmatpush.msra.mxu0 %v584
    %1303 = vmatpush.msra.mxu0 %v580
    %1304 = vmatmul.f32.gmra.mxu0 %v381
    %v1305 = vpop.f32.mrf.mxu0
    %v1306 = vadd.f32 %v1286, %v1305
    %1307 = vdwg.mxu0
    %1308 = vmatpush.msra.mxu0 %v704
    %1309 = vmatpush.msra.mxu0 %v700
    %1310 = vmatpush.msra.mxu0 %v696
    %1311 = vmatpush.msra.mxu0 %v692
    %1312 = vmatpush.msra.mxu0 %v688
    %1313 = vmatpush.msra.mxu0 %v684
    %1314 = vmatpush.msra.mxu0 %v680
    %1315 = vmatpush.msra.mxu0 %v676
    %1316 = vmatpush.msra.mxu0 %v672
    %1317 = vmatpush.msra.mxu0 %v668
    %1318 = vmatpush.msra.mxu0 %v664
    %1319 = vmatpush.msra.mxu0 %v660
    %1320 = vmatpush.msra.mxu0 %v656
    %1321 = vmatpush.msra.mxu0 %v652
    %1322 = vmatpush.msra.mxu0 %v648
    %1323 = vmatpush.msra.mxu0 %v644
    %1324 = vmatmul.f32.gmra.mxu0 %v382
    %v1325 = vpop.f32.mrf.mxu0
    %v1326 = vadd.f32 %v1306, %v1325
    %1327 = vdwg.mxu0
    %1328 = vmatpush.msra.mxu0 %v768
    %1329 = vmatpush.msra.mxu0 %v764
    %1330 = vmatpush.msra.mxu0 %v760
    %1331 = vmatpush.msra.mxu0 %v756
    %1332 = vmatpush.msra.mxu0 %v752
    %1333 = vmatpush.msra.mxu0 %v748
    %1334 = vmatpush.msra.mxu0 %v744
    %1335 = vmatpush.msra.mxu0 %v740
    %1336 = vmatpush.msra.mxu0 %v736
    %1337 = vmatpush.msra.mxu0 %v732
    %1338 = vmatpush.msra.mxu0 %v728
    %1339 = vmatpush.msra.mxu0 %v724
    %1340 = vmatpush.msra.mxu0 %v720
    %1341 = vmatpush.msra.mxu0 %v716
    %1342 = vmatpush.msra.mxu0 %v712
    %1343 = vmatpush.msra.mxu0 %v708
    %1344 = vmatmul.f32.gmra.mxu0 %v383
    %v1345 = vpop.f32.mrf.mxu0
    %v1346 = vadd.f32 %v1326, %v1345
    %1347 = vdwg.mxu0
    %1348 = vmatpush.msra.mxu0 %v832
    %1349 = vmatpush.msra.mxu0 %v828
    %1350 = vmatpush.msra.mxu0 %v824
    %1351 = vmatpush.msra.mxu0 %v820
    %1352 = vmatpush.msra.mxu0 %v816
    %1353 = vmatpush.msra.mxu0 %v812
    %1354 = vmatpush.msra.mxu0 %v808
    %1355 = vmatpush.msra.mxu0 %v804
    %1356 = vmatpush.msra.mxu0 %v800
    %1357 = vmatpush.msra.mxu0 %v796
    %1358 = vmatpush.msra.mxu0 %v792
    %1359 = vmatpush.msra.mxu0 %v788
    %1360 = vmatpush.msra.mxu0 %v784
    %1361 = vmatpush.msra.mxu0 %v780
    %1362 = vmatpush.msra.mxu0 %v776
    %1363 = vmatpush.msra.mxu0 %v772
    %1364 = vmatmul.f32.gmra.mxu0 %v384
    %v1365 = vpop.f32.mrf.mxu0
    %v1366 = vadd.f32 %v1346, %v1365
    %1367 = vdwg.mxu0
    %1368 = vmatpush.msra.mxu0 %v896
    %1369 = vmatpush.msra.mxu0 %v892
    %1370 = vmatpush.msra.mxu0 %v888
    %1371 = vmatpush.msra.mxu0 %v884
    %1372 = vmatpush.msra.mxu0 %v880
    %1373 = vmatpush.msra.mxu0 %v876
    %1374 = vmatpush.msra.mxu0 %v872
    %1375 = vmatpush.msra.mxu0 %v868
    %1376 = vmatpush.msra.mxu0 %v864
    %1377 = vmatpush.msra.mxu0 %v860
    %1378 = vmatpush.msra.mxu0 %v856
    %1379 = vmatpush.msra.mxu0 %v852
    %1380 = vmatpush.msra.mxu0 %v848
    %1381 = vmatpush.msra.mxu0 %v844
    %1382 = vmatpush.msra.mxu0 %v840
    %1383 = vmatpush.msra.mxu0 %v836
    %1384 = vmatmul.f32.gmra.mxu0 %v385
    %v1385 = vpop.f32.mrf.mxu0
    %v1386 = vadd.f32 %v1366, %v1385
    %1387 = vdwg.mxu0
    %1388 = vmatpush.msra.mxu0 %v449
    %1389 = vmatpush.msra.mxu0 %v445
    %1390 = vmatpush.msra.mxu0 %v441
    %1391 = vmatpush.msra.mxu0 %v437
    %1392 = vmatpush.msra.mxu0 %v433
    %1393 = vmatpush.msra.mxu0 %v429
    %1394 = vmatpush.msra.mxu0 %v425
    %1395 = vmatpush.msra.mxu0 %v421
    %1396 = vmatpush.msra.mxu0 %v417
    %1397 = vmatpush.msra.mxu0 %v413
    %1398 = vmatpush.msra.mxu0 %v409
    %1399 = vmatpush.msra.mxu0 %v405
    %1400 = vmatpush.msra.mxu0 %v401
    %1401 = vmatpush.msra.mxu0 %v397
    %1402 = vmatpush.msra.mxu0 %v393
    %1403 = vmatpush.msra.mxu0 %v389
    %1404 = vmatmul.f32.gmra.mxu0 %v378
    %v1405 = vpop.f32.mrf.mxu0
    %v1406 = vadd.f32 %v903, %v1405
    %1407 = vdwg.mxu0
    %1408 = vmatpush.msra.mxu0 %v513
    %1409 = vmatpush.msra.mxu0 %v509
    %1410 = vmatpush.msra.mxu0 %v505
    %1411 = vmatpush.msra.mxu0 %v501
    %1412 = vmatpush.msra.mxu0 %v497
    %1413 = vmatpush.msra.mxu0 %v493
    %1414 = vmatpush.msra.mxu0 %v489
    %1415 = vmatpush.msra.mxu0 %v485
    %1416 = vmatpush.msra.mxu0 %v481
    %1417 = vmatpush.msra.mxu0 %v477
    %1418 = vmatpush.msra.mxu0 %v473
    %1419 = vmatpush.msra.mxu0 %v469
    %1420 = vmatpush.msra.mxu0 %v465
    %1421 = vmatpush.msra.mxu0 %v461
    %1422 = vmatpush.msra.mxu0 %v457
    %1423 = vmatpush.msra.mxu0 %v453
    %1424 = vmatmul.f32.gmra.mxu0 %v379
    %v1425 = vpop.f32.mrf.mxu0
    %v1426 = vadd.f32 %v1406, %v1425
    %1427 = vdwg.mxu0
    %1428 = vmatpush.msra.mxu0 %v577
    %1429 = vmatpush.msra.mxu0 %v573
    %1430 = vmatpush.msra.mxu0 %v569
    %1431 = vmatpush.msra.mxu0 %v565
    %1432 = vmatpush.msra.mxu0 %v561
    %1433 = vmatpush.msra.mxu0 %v557
    %1434 = vmatpush.msra.mxu0 %v553
    %1435 = vmatpush.msra.mxu0 %v549
    %1436 = vmatpush.msra.mxu0 %v545
    %1437 = vmatpush.msra.mxu0 %v541
    %1438 = vmatpush.msra.mxu0 %v537
    %1439 = vmatpush.msra.mxu0 %v533
    %1440 = vmatpush.msra.mxu0 %v529
    %1441 = vmatpush.msra.mxu0 %v525
    %1442 = vmatpush.msra.mxu0 %v521
    %1443 = vmatpush.msra.mxu0 %v517
    %1444 = vmatmul.f32.gmra.mxu0 %v380
    %v1445 = vpop.f32.mrf.mxu0
    %v1446 = vadd.f32 %v1426, %v1445
    %1447 = vdwg.mxu0
    %1448 = vmatpush.msra.mxu0 %v641
    %1449 = vmatpush.msra.mxu0 %v637
    %1450 = vmatpush.msra.mxu0 %v633
    %1451 = vmatpush.msra.mxu0 %v629
    %1452 = vmatpush.msra.mxu0 %v625
    %1453 = vmatpush.msra.mxu0 %v621
    %1454 = vmatpush.msra.mxu0 %v617
    %1455 = vmatpush.msra.mxu0 %v613
    %1456 = vmatpush.msra.mxu0 %v609
    %1457 = vmatpush.msra.mxu0 %v605
    %1458 = vmatpush.msra.mxu0 %v601
    %1459 = vmatpush.msra.mxu0 %v597
    %1460 = vmatpush.msra.mxu0 %v593
    %1461 = vmatpush.msra.mxu0 %v589
    %1462 = vmatpush.msra.mxu0 %v585
    %1463 = vmatpush.msra.mxu0 %v581
    %1464 = vmatmul.f32.gmra.mxu0 %v381
    %v1465 = vpop.f32.mrf.mxu0
    %v1466 = vadd.f32 %v1446, %v1465
    %1467 = vdwg.mxu0
    %1468 = vmatpush.msra.mxu0 %v705
    %1469 = vmatpush.msra.mxu0 %v701
    %1470 = vmatpush.msra.mxu0 %v697
    %1471 = vmatpush.msra.mxu0 %v693
    %1472 = vmatpush.msra.mxu0 %v689
    %1473 = vmatpush.msra.mxu0 %v685
    %1474 = vmatpush.msra.mxu0 %v681
    %1475 = vmatpush.msra.mxu0 %v677
    %1476 = vmatpush.msra.mxu0 %v673
    %1477 = vmatpush.msra.mxu0 %v669
    %1478 = vmatpush.msra.mxu0 %v665
    %1479 = vmatpush.msra.mxu0 %v661
    %1480 = vmatpush.msra.mxu0 %v657
    %1481 = vmatpush.msra.mxu0 %v653
    %1482 = vmatpush.msra.mxu0 %v649
    %1483 = vmatpush.msra.mxu0 %v645
    %1484 = vmatmul.f32.gmra.mxu0 %v382
    %v1485 = vpop.f32.mrf.mxu0
    %v1486 = vadd.f32 %v1466, %v1485
    %1487 = vdwg.mxu0
    %1488 = vmatpush.msra.mxu0 %v769
    %1489 = vmatpush.msra.mxu0 %v765
    %1490 = vmatpush.msra.mxu0 %v761
    %1491 = vmatpush.msra.mxu0 %v757
    %1492 = vmatpush.msra.mxu0 %v753
    %1493 = vmatpush.msra.mxu0 %v749
    %1494 = vmatpush.msra.mxu0 %v745
    %1495 = vmatpush.msra.mxu0 %v741
    %1496 = vmatpush.msra.mxu0 %v737
    %1497 = vmatpush.msra.mxu0 %v733
    %1498 = vmatpush.msra.mxu0 %v729
    %1499 = vmatpush.msra.mxu0 %v725
    %1500 = vmatpush.msra.mxu0 %v721
    %1501 = vmatpush.msra.mxu0 %v717
    %1502 = vmatpush.msra.mxu0 %v713
    %1503 = vmatpush.msra.mxu0 %v709
    %1504 = vmatmul.f32.gmra.mxu0 %v383
    %v1505 = vpop.f32.mrf.mxu0
    %v1506 = vadd.f32 %v1486, %v1505
    %1507 = vdwg.mxu0
    %1508 = vmatpush.msra.mxu0 %v833
    %1509 = vmatpush.msra.mxu0 %v829
    %1510 = vmatpush.msra.mxu0 %v825
    %1511 = vmatpush.msra.mxu0 %v821
    %1512 = vmatpush.msra.mxu0 %v817
    %1513 = vmatpush.msra.mxu0 %v813
    %1514 = vmatpush.msra.mxu0 %v809
    %1515 = vmatpush.msra.mxu0 %v805
    %1516 = vmatpush.msra.mxu0 %v801
    %1517 = vmatpush.msra.mxu0 %v797
    %1518 = vmatpush.msra.mxu0 %v793
    %1519 = vmatpush.msra.mxu0 %v789
    %1520 = vmatpush.msra.mxu0 %v785
    %1521 = vmatpush.msra.mxu0 %v781
    %1522 = vmatpush.msra.mxu0 %v777
    %1523 = vmatpush.msra.mxu0 %v773
    %1524 = vmatmul.f32.gmra.mxu0 %v384
    %v1525 = vpop.f32.mrf.mxu0
    %v1526 = vadd.f32 %v1506, %v1525
    %1527 = vdwg.mxu0
    %1528 = vmatpush.msra.mxu0 %v897
    %1529 = vmatpush.msra.mxu0 %v893
    %1530 = vmatpush.msra.mxu0 %v889
    %1531 = vmatpush.msra.mxu0 %v885
    %1532 = vmatpush.msra.mxu0 %v881
    %1533 = vmatpush.msra.mxu0 %v877
    %1534 = vmatpush.msra.mxu0 %v873
    %1535 = vmatpush.msra.mxu0 %v869
    %1536 = vmatpush.msra.mxu0 %v865
    %1537 = vmatpush.msra.mxu0 %v861
    %1538 = vmatpush.msra.mxu0 %v857
    %1539 = vmatpush.msra.mxu0 %v853
    %1540 = vmatpush.msra.mxu0 %v849
    %1541 = vmatpush.msra.mxu0 %v845
    %1542 = vmatpush.msra.mxu0 %v841
    %1543 = vmatpush.msra.mxu0 %v837
    %1544 = vmatmul.f32.gmra.mxu0 %v385
    %v1545 = vpop.f32.mrf.mxu0
    %v1546 = vadd.f32 %v1526, %v1545
    %1547 = vdwg.mxu0
    %vm1548 = vcmp.ge.f32.partialorder %v1066, 0.0
    %vm1549 = vcmp.ge.f32.partialorder %v1226, 0.0
    %vm1550 = vcmp.ge.f32.partialorder %v1386, 0.0
    %vm1551 = vcmp.ge.f32.partialorder %v1546, 0.0
    %v1552 = vstv %s145
    %v1553 = vmul.f32 %v1552, %v1066
    %v1554 = vmul.f32 %v1552, %v1226
    %v1555 = vmul.f32 %v1552, %v1386
    %v1556 = vmul.f32 %v1552, %v1546
    %v1557 = vsel %vm1548, %v1066, %v1553
    %v1558 = vsel %vm1549, %v1226, %v1554
    %v1559 = vsel %vm1550, %v1386, %v1555
    %v1560 = vsel %vm1551, %v1546, %v1556
    %v1561 = vld [vmem:[#allocation12] sm:$0xff]
    %v1562 = vld [vmem:[#allocation12 + $0x8] sm:$0xff]
    %v1563 = vld [vmem:[#allocation12 + $0x10] sm:$0xff]
    %v1564 = vld [vmem:[#allocation12 + $0x18] sm:$0xff]
    %v1565 = vld [vmem:[#allocation12 + $0x20] sm:$0xff]
    %v1566 = vld [vmem:[#allocation12 + $0x28] sm:$0xff]
    %v1567 = vld [vmem:[#allocation12 + $0x30] sm:$0xff]
    %v1568 = vld [vmem:[#allocation12 + $0x38] sm:$0xff]
    %v1569 = vld [vmem:[#allocation12 + $0x40] sm:$0xff]
    %v1570 = vld [vmem:[#allocation12 + $0x48] sm:$0xff]
    %v1571 = vld [vmem:[#allocation12 + $0x50] sm:$0xff]
    %v1572 = vld [vmem:[#allocation12 + $0x58] sm:$0xff]
    %v1573 = vld [vmem:[#allocation12 + $0x60] sm:$0xff]
    %v1574 = vld [vmem:[#allocation12 + $0x68] sm:$0xff]
    %v1575 = vld [vmem:[#allocation12 + $0x70] sm:$0xff]
    %v1576 = vld [vmem:[#allocation12 + $0x78] sm:$0xff]
    %v1577 = vld [vmem:[#allocation12 + $0x80] sm:$0xff]
    %v1578 = vld [vmem:[#allocation12 + $0x88] sm:$0xff]
    %v1579 = vld [vmem:[#allocation12 + $0x90] sm:$0xff]
    %v1580 = vld [vmem:[#allocation12 + $0x98] sm:$0xff]
    %v1581 = vld [vmem:[#allocation12 + $0xa0] sm:$0xff]
    %v1582 = vld [vmem:[#allocation12 + $0xa8] sm:$0xff]
    %v1583 = vld [vmem:[#allocation12 + $0xb0] sm:$0xff]
    %v1584 = vld [vmem:[#allocation12 + $0xb8] sm:$0xff]
    %v1585 = vld [vmem:[#allocation12 + $0xc0] sm:$0xff]
    %v1586 = vld [vmem:[#allocation12 + $0xc8] sm:$0xff]
    %v1587 = vld [vmem:[#allocation12 + $0xd0] sm:$0xff]
    %v1588 = vld [vmem:[#allocation12 + $0xd8] sm:$0xff]
    %v1589 = vld [vmem:[#allocation12 + $0xe0] sm:$0xff]
    %v1590 = vld [vmem:[#allocation12 + $0xe8] sm:$0xff]
    %v1591 = vld [vmem:[#allocation12 + $0xf0] sm:$0xff]
    %v1592 = vld [vmem:[#allocation12 + $0xf8] sm:$0xff]
    %v1593 = vld [vmem:[#allocation12 + $0x100] sm:$0xff]
    %v1594 = vld [vmem:[#allocation12 + $0x108] sm:$0xff]
    %v1595 = vld [vmem:[#allocation12 + $0x110] sm:$0xff]
    %v1596 = vld [vmem:[#allocation12 + $0x118] sm:$0xff]
    %v1597 = vld [vmem:[#allocation12 + $0x120] sm:$0xff]
    %v1598 = vld [vmem:[#allocation12 + $0x128] sm:$0xff]
    %v1599 = vld [vmem:[#allocation12 + $0x130] sm:$0xff]
    %v1600 = vld [vmem:[#allocation12 + $0x138] sm:$0xff]
    %v1601 = vld [vmem:[#allocation12 + $0x140] sm:$0xff]
    %v1602 = vld [vmem:[#allocation12 + $0x148] sm:$0xff]
    %v1603 = vld [vmem:[#allocation12 + $0x150] sm:$0xff]
    %v1604 = vld [vmem:[#allocation12 + $0x158] sm:$0xff]
    %v1605 = vld [vmem:[#allocation12 + $0x160] sm:$0xff]
    %v1606 = vld [vmem:[#allocation12 + $0x168] sm:$0xff]
    %v1607 = vld [vmem:[#allocation12 + $0x170] sm:$0xff]
    %v1608 = vld [vmem:[#allocation12 + $0x178] sm:$0xff]
    %v1609 = vld [vmem:[#allocation12 + $0x180] sm:$0xff]
    %v1610 = vld [vmem:[#allocation12 + $0x188] sm:$0xff]
    %v1611 = vld [vmem:[#allocation12 + $0x190] sm:$0xff]
    %v1612 = vld [vmem:[#allocation12 + $0x198] sm:$0xff]
    %v1613 = vld [vmem:[#allocation12 + $0x1a0] sm:$0xff]
    %v1614 = vld [vmem:[#allocation12 + $0x1a8] sm:$0xff]
    %v1615 = vld [vmem:[#allocation12 + $0x1b0] sm:$0xff]
    %v1616 = vld [vmem:[#allocation12 + $0x1b8] sm:$0xff]
    %v1617 = vld [vmem:[#allocation12 + $0x1c0] sm:$0xff]
    %v1618 = vld [vmem:[#allocation12 + $0x1c8] sm:$0xff]
    %v1619 = vld [vmem:[#allocation12 + $0x1d0] sm:$0xff]
    %v1620 = vld [vmem:[#allocation12 + $0x1d8] sm:$0xff]
    %v1621 = vld [vmem:[#allocation12 + $0x1e0] sm:$0xff]
    %v1622 = vld [vmem:[#allocation12 + $0x1e8] sm:$0xff]
    %v1623 = vld [vmem:[#allocation12 + $0x1f0] sm:$0xff]
    %v1624 = vld [vmem:[#allocation12 + $0x1f8] sm:$0xff]
    %v1625 = vld [vmem:[#allocation14] sm:$0x1]
    %v1627 = vperm.slane %v1625, 0
    %1629 = vmatpush.msra.mxu0 %v1576
    %1630 = vmatpush.msra.mxu0 %v1575
    %1631 = vmatpush.msra.mxu0 %v1574
    %1632 = vmatpush.msra.mxu0 %v1573
    %1633 = vmatpush.msra.mxu0 %v1572
    %1634 = vmatpush.msra.mxu0 %v1571
    %1635 = vmatpush.msra.mxu0 %v1570
    %1636 = vmatpush.msra.mxu0 %v1569
    %1637 = vmatpush.msra.mxu0 %v1568
    %1638 = vmatpush.msra.mxu0 %v1567
    %1639 = vmatpush.msra.mxu0 %v1566
    %1640 = vmatpush.msra.mxu0 %v1565
    %1641 = vmatpush.msra.mxu0 %v1564
    %1642 = vmatpush.msra.mxu0 %v1563
    %1643 = vmatpush.msra.mxu0 %v1562
    %1644 = vmatpush.msra.mxu0 %v1561
    %1645 = vmatmul.f32.gmra.mxu0 %v1557
    %v1646 = vpop.f32.mrf.mxu0
    %v1647 = vadd.f32 %v1627, %v1646
    %1648 = vdwg.mxu0
    %1649 = vmatpush.msra.mxu0 %v1592
    %1650 = vmatpush.msra.mxu0 %v1591
    %1651 = vmatpush.msra.mxu0 %v1590
    %1652 = vmatpush.msra.mxu0 %v1589
    %1653 = vmatpush.msra.mxu0 %v1588
    %1654 = vmatpush.msra.mxu0 %v1587
    %1655 = vmatpush.msra.mxu0 %v1586
    %1656 = vmatpush.msra.mxu0 %v1585
    %1657 = vmatpush.msra.mxu0 %v1584
    %1658 = vmatpush.msra.mxu0 %v1583
    %1659 = vmatpush.msra.mxu0 %v1582
    %1660 = vmatpush.msra.mxu0 %v1581
    %1661 = vmatpush.msra.mxu0 %v1580
    %1662 = vmatpush.msra.mxu0 %v1579
    %1663 = vmatpush.msra.mxu0 %v1578
    %1664 = vmatpush.msra.mxu0 %v1577
    %1665 = vmatmul.f32.gmra.mxu0 %v1558
    %v1666 = vpop.f32.mrf.mxu0
    %v1667 = vadd.f32 %v1647, %v1666
    %1668 = vdwg.mxu0
    %1669 = vmatpush.msra.mxu0 %v1608
    %1670 = vmatpush.msra.mxu0 %v1607
    %1671 = vmatpush.msra.mxu0 %v1606
    %1672 = vmatpush.msra.mxu0 %v1605
    %1673 = vmatpush.msra.mxu0 %v1604
    %1674 = vmatpush.msra.mxu0 %v1603
    %1675 = vmatpush.msra.mxu0 %v1602
    %1676 = vmatpush.msra.mxu0 %v1601
    %1677 = vmatpush.msra.mxu0 %v1600
    %1678 = vmatpush.msra.mxu0 %v1599
    %1679 = vmatpush.msra.mxu0 %v1598
    %1680 = vmatpush.msra.mxu0 %v1597
    %1681 = vmatpush.msra.mxu0 %v1596
    %1682 = vmatpush.msra.mxu0 %v1595
    %1683 = vmatpush.msra.mxu0 %v1594
    %1684 = vmatpush.msra.mxu0 %v1593
    %1685 = vmatmul.f32.gmra.mxu0 %v1559
    %v1686 = vpop.f32.mrf.mxu0
    %v1687 = vadd.f32 %v1667, %v1686
    %1688 = vdwg.mxu0
    %1689 = vmatpush.msra.mxu0 %v1624
    %1690 = vmatpush.msra.mxu0 %v1623
    %1691 = vmatpush.msra.mxu0 %v1622
    %1692 = vmatpush.msra.mxu0 %v1621
    %1693 = vmatpush.msra.mxu0 %v1620
    %1694 = vmatpush.msra.mxu0 %v1619
    %1695 = vmatpush.msra.mxu0 %v1618
    %1696 = vmatpush.msra.mxu0 %v1617
    %1697 = vmatpush.msra.mxu0 %v1616
    %1698 = vmatpush.msra.mxu0 %v1615
    %1699 = vmatpush.msra.mxu0 %v1614
    %1700 = vmatpush.msra.mxu0 %v1613
    %1701 = vmatpush.msra.mxu0 %v1612
    %1702 = vmatpush.msra.mxu0 %v1611
    %1703 = vmatpush.msra.mxu0 %v1610
    %1704 = vmatpush.msra.mxu0 %v1609
    %1705 = vmatmul.f32.gmra.mxu0 %v1560
    %v1706 = vpop.f32.mrf.mxu0
    %v1707 = vadd.f32 %v1687, %v1706
    %1708 = vdwg.mxu0
    %v1709 = vtanh.pop %v1707
    %1710 = vst [vmem:[#allocation16] sm:$0xff] %v1709
    // Predicated region
    $region66: #{tpu_custom_call.1} parent=1 // pred_check
      _
    $region67: #{tpu_custom_call.1} parent=1 // pred_check_branch
      %1712 = sbr.rel (0) target = $region69
    $region68: #{tpu_custom_call.1} parent=1 // pred_region
      %1714 = vsyncadd [#allocation4], 0
      %s1716 = sshll.u32 [#allocation16], 4
      %s1717 = int_to_ptr.vmem [resolvable:$true] %s1716
      %s1718 = sshll.u32 %s8, 4
      %s1719 = int_to_ptr.hbm [resolvable:$true] %s1718
      %1721 = dma.vmem_to_hbm [thread:$0]  %s1717, 128, %s1719, [#allocation4]
    $region69: #{tpu_custom_call.1} parent=1 // pred_fallthru
      _
    // Predicated region
    $region70: #{tpu_custom_call.1} parent=1 // pred_check
      _
    $region71: #{tpu_custom_call.1} parent=1 // pred_check_branch
      %1723 = sbr.rel (0) target = $region73
    $region72: #{tpu_custom_call.1} parent=1 // pred_region
      %1725 = dma.done [#allocation4], 128
    $region73: #{tpu_custom_call.1} parent=1 // pred_fallthru
      _
    %1726 = vsyncpa [#allocation3], 1
    %1727 = vsyncpa [#allocation7], 1
    %1728 = vsyncpa [#allocation10], 1
    %1729 = vsyncpa [#allocation13], 1
    %1730 = vsyncpa [#allocation4], 1
    %1731 = vsyncpa [#allocation5], 1

</llo_original>
